<compile_context>
chip_gen: v5e
topology: v5e:2x2
jax: 0.10.0
libtpu: 0.0.40
codegen_flags: <defaults>
</compile_context>

<pallas_src>
import functools

import jax
import jax.numpy as jnp
import numpy as np
from jax import lax
from jax.experimental import pallas as pl
from jax.experimental.pallas import tpu as pltpu

# ----------------------------- model config ---------------------------------
IN_CHANNELS = 4     # LSTM input_size
HIDDEN = 32         # hidden_dim (small shape for the synthetic test; 4H = 128 lanes)
N_LAYERS = 2
OUT_SIZE = 2        # fc maps hidden_dim -> 2
BATCH = 2
SEQ = 8


# ------------------------------ Pallas kernel --------------------------------
def lstm_disc_kernel(x_ref,                      # (T*B, C)  time-major, flattened
                     wih0_ref, whh0_ref, b0_ref,  # layer 0: (C,4H), (H,4H), (1,4H)
                     wih1_ref, whh1_ref, b1_ref,  # layer 1: (H,4H), (H,4H), (1,4H)
                     fcw_ref, fcb_ref,            # fc: (H,2), (1,2)
                     out_ref,                     # (T*B, 2) log-softmax output
                     hn_ref, cn_ref,              # (2, B, H) final hidden / cell
                     *, seq_len, batch):
    T, B = seq_len, batch
    H = whh0_ref.shape[0]

    # Read recurrent weights once; no per-step ref reloads or bias re-broadcasts.
    whh0 = whh0_ref[...]
    whh1 = whh1_ref[...]

    def cell(g_pre, h_prev, c_prev, whh):
        # Per-step critical path: one (B,H)@(H,4H) matmul + activations.
        gates = g_pre + jnp.dot(h_prev, whh, preferred_element_type=jnp.float32)
        i_g = jax.nn.sigmoid(gates[:, 0 * H:1 * H])
        f_g = jax.nn.sigmoid(gates[:, 1 * H:2 * H])
        g_g = jnp.tanh(gates[:, 2 * H:3 * H])
        o_g = jax.nn.sigmoid(gates[:, 3 * H:4 * H])
        c_new = f_g * c_prev + i_g * g_g
        h_new = o_g * jnp.tanh(c_new)
        return h_new, c_new

    zero = jnp.zeros((B, H), jnp.float32)

    # ---- Layer 0: batched input projection, then unrolled recurrence ----
    g0_all = (jnp.dot(x_ref[...], wih0_ref[...],
                      preferred_element_type=jnp.float32) + b0_ref[...])   # (T*B, 4H)
    h0, c0 = zero, zero
    h0_pieces = []
    for t in range(T):                           # static T -> fully unrolled
        h0, c0 = cell(g0_all[t * B:(t + 1) * B, :], h0, c0, whh0)
        h0_pieces.append(h0)
    h0_all = jnp.concatenate(h0_pieces, axis=0)  # (T*B, H)

    # ---- Layer 1: batched input projection over the layer-0 slab ----
    g1_all = (jnp.dot(h0_all, wih1_ref[...],
                      preferred_element_type=jnp.float32) + b1_ref[...])   # (T*B, 4H)
    h1, c1 = zero, zero
    h1_pieces = []
    for t in range(T):
        h1, c1 = cell(g1_all[t * B:(t + 1) * B, :], h1, c1, whh1)
        h1_pieces.append(h1)
    h1_all = jnp.concatenate(h1_pieces, axis=0)  # (T*B, H)

    # Final states (PyTorch (num_layers, B, H)).
    hn_ref[0] = h0
    hn_ref[1] = h1
    cn_ref[0] = c0
    cn_ref[1] = c1

    # ---- FC once over the whole slab, log-softmax over the time axis ----
    logits = (jnp.dot(h1_all, fcw_ref[...],
                      preferred_element_type=jnp.float32) + fcb_ref[...])  # (T*B, 2)
    rows = [logits[t * B:(t + 1) * B, :] for t in range(T)]                # each (B, 2)
    m = functools.reduce(jnp.maximum, rows)                                # (B, 2)
    s = functools.reduce(jnp.add, [jnp.exp(r - m) for r in rows])
    lse = jnp.log(s) + m                                                   # (B, 2)
    # Single output store (no per-step partial stores).
    out_ref[...] = jnp.concatenate([r - lse for r in rows], axis=0)


# ------------------------------ wrapper ---------------------------------------
@jax.jit
def discriminator_forward(x, params):
    """x: (B, T, C) float32 (batch_first, like PyTorch). Returns (out, (h_n, c_n))."""
    B, T, C = x.shape
    H = params["whh0"].shape[0]
    # time-major + flatten: row t*B + b == x[b, t, :]
    x_flat = jnp.transpose(x, (1, 0, 2)).reshape(T * B, C)

    vmem = pl.BlockSpec(memory_space=pltpu.MemorySpace.VMEM)
    kernel = functools.partial(lstm_disc_kernel, seq_len=T, batch=B)
    out_flat, hn, cn = pl.pallas_call(
        kernel,
        out_shape=(
            jax.ShapeDtypeStruct((T * B, OUT_SIZE), jnp.float32),
            jax.ShapeDtypeStruct((N_LAYERS, B, H), jnp.float32),
            jax.ShapeDtypeStruct((N_LAYERS, B, H), jnp.float32),
        ),
        in_specs=[vmem] * 9,
        out_specs=(vmem, vmem, vmem),
    )(x_flat,
      params["wih0"], params["whh0"], params["b0"],
      params["wih1"], params["whh1"], params["b1"],
      params["fcw"], params["fcb"])

    out = jnp.transpose(out_flat.reshape(T, B, OUT_SIZE), (1, 0, 2))  # (B, T, 2)
    return out, (hn, cn)


# --------------------------- deterministic params ----------------------------
def init_params(key, in_channels=IN_CHANNELS, hidden=HIDDEN):
    ks = jax.random.split(key, 12)
    s = 1.0 / np.sqrt(hidden)

    def u(k, shape):
        return jax.random.uniform(k, shape, jnp.float32, -s, s)

    # PyTorch layout: weight_ih_l{k}: (4H, in), weight_hh_l{k}: (4H, H); gate order i,f,g,o.
    w_ih0 = u(ks[0], (4 * hidden, in_channels))
    w_hh0 = u(ks[1], (4 * hidden, hidden))
    b_ih0 = u(ks[2], (4 * hidden,))
    b_hh0 = u(ks[3], (4 * hidden,))
    w_ih1 = u(ks[4], (4 * hidden, hidden))
    w_hh1 = u(ks[5], (4 * hidden, hidden))
    b_ih1 = u(ks[6], (4 * hidden,))
    b_hh1 = u(ks[7], (4 * hidden,))
    fc_w = u(ks[8], (OUT_SIZE, hidden))                    # nn.Linear: (out, in)
    fc_b = u(ks[9], (OUT_SIZE,))

    return {
        "wih0": w_ih0.T, "whh0": w_hh0.T, "b0": (b_ih0 + b_hh0)[None, :],
        "wih1": w_ih1.T, "whh1": w_hh1.T, "b1": (b_ih1 + b_hh1)[None, :],
        "fcw": fc_w.T, "fcb": fc_b[None, :],
    }


# --------------------------- pure-JAX reference -------------------------------
def reference_forward(x, params):
    B, T, C = x.shape
    H = params["whh0"].shape[0]

    def cell(x_in, h, c, wih, whh, b):
        g = x_in @ wih + h @ whh + b
        i_g = jax.nn.sigmoid(g[:, 0 * H:1 * H])
        f_g = jax.nn.sigmoid(g[:, 1 * H:2 * H])
        g_g = jnp.tanh(g[:, 2 * H:3 * H])
        o_g = jax.nn.sigmoid(g[:, 3 * H:4 * H])
        c = f_g * c + i_g * g_g
        h = o_g * jnp.tanh(c)
        return h, c

    def step(carry, x_t):
        h0, c0, h1, c1 = carry
        h0, c0 = cell(x_t, h0, c0, params["wih0"], params["whh0"], params["b0"])
        h1, c1 = cell(h0, h1, c1, params["wih1"], params["whh1"], params["b1"])
        logits = h1 @ params["fcw"] + params["fcb"]
        return (h0, c0, h1, c1), logits

    zero = jnp.zeros((B, H), jnp.float32)
    (h0, c0, h1, c1), logits = lax.scan(step, (zero, zero, zero, zero),
                                        jnp.transpose(x, (1, 0, 2)))
    out = jnp.transpose(logits, (1, 0, 2))                 # (B, T, 2)
    out = jax.nn.log_softmax(out, axis=1)                  # LogSoftmax(dim=1)
    hn = jnp.stack([h0, h1])
    cn = jnp.stack([c0, c1])
    return out, (hn, cn)


# ---------------------------------- main --------------------------------------
if __name__ == "__main__":
    key = jax.random.PRNGKey(0)
    k_x, k_p = jax.random.split(key)
    x = jax.random.normal(k_x, (BATCH, SEQ, IN_CHANNELS), jnp.float32)
    params = init_params(k_p)

    out, (hn, cn) = discriminator_forward(x, params)
    jax.block_until_ready((out, hn, cn))

    ref_out, (ref_hn, ref_cn) = reference_forward(x, params)
    np.testing.assert_allclose(np.asarray(out), np.asarray(ref_out), atol=1e-5, rtol=1e-5)
    np.testing.assert_allclose(np.asarray(hn), np.asarray(ref_hn), atol=1e-5, rtol=1e-5)
    np.testing.assert_allclose(np.asarray(cn), np.asarray(ref_cn), atol=1e-5, rtol=1e-5)

    assert out.shape == (BATCH, SEQ, OUT_SIZE)
    assert hn.shape == (N_LAYERS, BATCH, HIDDEN) and cn.shape == (N_LAYERS, BATCH, HIDDEN)
    print("KERNEL_OK")
</pallas_src>

<mosaic_0001>
module attributes {stable_mosaic.version = 11 : i64} {
  func.func @lstm_disc_kernel(%arg0: memref<16x4xf32, #tpu.memory_space<vmem>>, %arg1: memref<4x128xf32, #tpu.memory_space<vmem>>, %arg2: memref<32x128xf32, #tpu.memory_space<vmem>>, %arg3: memref<1x128xf32, #tpu.memory_space<vmem>>, %arg4: memref<32x128xf32, #tpu.memory_space<vmem>>, %arg5: memref<32x128xf32, #tpu.memory_space<vmem>>, %arg6: memref<1x128xf32, #tpu.memory_space<vmem>>, %arg7: memref<32x2xf32, #tpu.memory_space<vmem>>, %arg8: memref<1x2xf32, #tpu.memory_space<vmem>>, %arg9: memref<16x2xf32, #tpu.memory_space<vmem>>, %arg10: memref<2x2x32xf32, #tpu.memory_space<vmem>>, %arg11: memref<2x2x32xf32, #tpu.memory_space<vmem>>) attributes {dimension_semantics = [], scalar_prefetch = 0 : i64, scratch_operands = 0 : i64, tpu.core_type = #tpu.core_type<tc>} {
    %c0 = arith.constant 0 : index
    %c0_0 = arith.constant 0 : index
    %0 = vector.load %arg2[%c0, %c0_0] : memref<32x128xf32, #tpu.memory_space<vmem>>, vector<32x128xf32>
    %c0_1 = arith.constant 0 : index
    %c0_2 = arith.constant 0 : index
    %1 = vector.load %arg5[%c0_1, %c0_2] : memref<32x128xf32, #tpu.memory_space<vmem>>, vector<32x128xf32>
    %cst = arith.constant 0.000000e+00 : f32
    %2 = vector.broadcast %cst : f32 to vector<2x32xf32>
    %c0_3 = arith.constant 0 : index
    %c0_4 = arith.constant 0 : index
    %3 = vector.load %arg0[%c0_3, %c0_4] : memref<16x4xf32, #tpu.memory_space<vmem>>, vector<16x4xf32>
    %c0_5 = arith.constant 0 : index
    %c0_6 = arith.constant 0 : index
    %4 = vector.load %arg1[%c0_5, %c0_6] : memref<4x128xf32, #tpu.memory_space<vmem>>, vector<4x128xf32>
    %cst_7 = arith.constant dense<0.000000e+00> : vector<16x128xf32>
    %5 = tpu.matmul %3, %4, %cst_7 {dimension_numbers = #tpu.dot_dimension_numbers<[1], [0], [0], [1], [0, 0, 1, 1], [], []>} : vector<16x4xf32>, vector<4x128xf32>, vector<16x128xf32> -> vector<16x128xf32>
    %c0_8 = arith.constant 0 : index
    %c0_9 = arith.constant 0 : index
    %6 = vector.load %arg3[%c0_8, %c0_9] : memref<1x128xf32, #tpu.memory_space<vmem>>, vector<1x128xf32>
    %7 = vector.broadcast %6 : vector<1x128xf32> to vector<16x128xf32>
    %8 = arith.addf %5, %7 : vector<16x128xf32>
    %9 = vector.extract_strided_slice %8 {offsets = [0, 0], sizes = [2, 128], strides = [1, 1]} : vector<16x128xf32> to vector<2x128xf32>
    %cst_10 = arith.constant dense<0.000000e+00> : vector<2x128xf32>
    %10 = tpu.matmul %2, %0, %cst_10 {dimension_numbers = #tpu.dot_dimension_numbers<[1], [0], [0], [1], [0, 0, 1, 1], [], []>} : vector<2x32xf32>, vector<32x128xf32>, vector<2x128xf32> -> vector<2x128xf32>
    %11 = arith.addf %9, %10 : vector<2x128xf32>
    %12 = vector.extract_strided_slice %11 {offsets = [0, 0], sizes = [2, 32], strides = [1, 1]} : vector<2x128xf32> to vector<2x32xf32>
    %13 = arith.negf %12 : vector<2x32xf32>
    %14 = math.exp %13 : vector<2x32xf32>
    %cst_11 = arith.constant 1.000000e+00 : f32
    %15 = vector.broadcast %cst_11 : f32 to vector<2x32xf32>
    %16 = arith.addf %15, %14 : vector<2x32xf32>
    %17 = arith.divf %15, %16 : vector<2x32xf32>
    %18 = vector.extract_strided_slice %11 {offsets = [0, 32], sizes = [2, 32], strides = [1, 1]} : vector<2x128xf32> to vector<2x32xf32>
    %19 = arith.negf %18 : vector<2x32xf32>
    %20 = math.exp %19 : vector<2x32xf32>
    %cst_12 = arith.constant 1.000000e+00 : f32
    %21 = vector.broadcast %cst_12 : f32 to vector<2x32xf32>
    %22 = arith.addf %21, %20 : vector<2x32xf32>
    %23 = arith.divf %21, %22 : vector<2x32xf32>
    %24 = vector.extract_strided_slice %11 {offsets = [0, 64], sizes = [2, 32], strides = [1, 1]} : vector<2x128xf32> to vector<2x32xf32>
    %25 = math.tanh %24 : vector<2x32xf32>
    %26 = vector.extract_strided_slice %11 {offsets = [0, 96], sizes = [2, 32], strides = [1, 1]} : vector<2x128xf32> to vector<2x32xf32>
    %27 = arith.negf %26 : vector<2x32xf32>
    %28 = math.exp %27 : vector<2x32xf32>
    %cst_13 = arith.constant 1.000000e+00 : f32
    %29 = vector.broadcast %cst_13 : f32 to vector<2x32xf32>
    %30 = arith.addf %29, %28 : vector<2x32xf32>
    %31 = arith.divf %29, %30 : vector<2x32xf32>
    %32 = arith.mulf %23, %2 : vector<2x32xf32>
    %33 = arith.mulf %17, %25 : vector<2x32xf32>
    %34 = arith.addf %32, %33 : vector<2x32xf32>
    %35 = math.tanh %34 : vector<2x32xf32>
    %36 = arith.mulf %31, %35 : vector<2x32xf32>
    %37 = vector.extract_strided_slice %8 {offsets = [2, 0], sizes = [2, 128], strides = [1, 1]} : vector<16x128xf32> to vector<2x128xf32>
    %cst_14 = arith.constant dense<0.000000e+00> : vector<2x128xf32>
    %38 = tpu.matmul %36, %0, %cst_14 {dimension_numbers = #tpu.dot_dimension_numbers<[1], [0], [0], [1], [0, 0, 1, 1], [], []>} : vector<2x32xf32>, vector<32x128xf32>, vector<2x128xf32> -> vector<2x128xf32>
    %39 = arith.addf %37, %38 : vector<2x128xf32>
    %40 = vector.extract_strided_slice %39 {offsets = [0, 0], sizes = [2, 32], strides = [1, 1]} : vector<2x128xf32> to vector<2x32xf32>
    %41 = arith.negf %40 : vector<2x32xf32>
    %42 = math.exp %41 : vector<2x32xf32>
    %cst_15 = arith.constant 1.000000e+00 : f32
    %43 = vector.broadcast %cst_15 : f32 to vector<2x32xf32>
    %44 = arith.addf %43, %42 : vector<2x32xf32>
    %45 = arith.divf %43, %44 : vector<2x32xf32>
    %46 = vector.extract_strided_slice %39 {offsets = [0, 32], sizes = [2, 32], strides = [1, 1]} : vector<2x128xf32> to vector<2x32xf32>
    %47 = arith.negf %46 : vector<2x32xf32>
    %48 = math.exp %47 : vector<2x32xf32>
    %cst_16 = arith.constant 1.000000e+00 : f32
    %49 = vector.broadcast %cst_16 : f32 to vector<2x32xf32>
    %50 = arith.addf %49, %48 : vector<2x32xf32>
    %51 = arith.divf %49, %50 : vector<2x32xf32>
    %52 = vector.extract_strided_slice %39 {offsets = [0, 64], sizes = [2, 32], strides = [1, 1]} : vector<2x128xf32> to vector<2x32xf32>
    %53 = math.tanh %52 : vector<2x32xf32>
    %54 = vector.extract_strided_slice %39 {offsets = [0, 96], sizes = [2, 32], strides = [1, 1]} : vector<2x128xf32> to vector<2x32xf32>
    %55 = arith.negf %54 : vector<2x32xf32>
    %56 = math.exp %55 : vector<2x32xf32>
    %cst_17 = arith.constant 1.000000e+00 : f32
    %57 = vector.broadcast %cst_17 : f32 to vector<2x32xf32>
    %58 = arith.addf %57, %56 : vector<2x32xf32>
    %59 = arith.divf %57, %58 : vector<2x32xf32>
    %60 = arith.mulf %51, %34 : vector<2x32xf32>
    %61 = arith.mulf %45, %53 : vector<2x32xf32>
    %62 = arith.addf %60, %61 : vector<2x32xf32>
    %63 = math.tanh %62 : vector<2x32xf32>
    %64 = arith.mulf %59, %63 : vector<2x32xf32>
    %65 = vector.extract_strided_slice %8 {offsets = [4, 0], sizes = [2, 128], strides = [1, 1]} : vector<16x128xf32> to vector<2x128xf32>
    %cst_18 = arith.constant dense<0.000000e+00> : vector<2x128xf32>
    %66 = tpu.matmul %64, %0, %cst_18 {dimension_numbers = #tpu.dot_dimension_numbers<[1], [0], [0], [1], [0, 0, 1, 1], [], []>} : vector<2x32xf32>, vector<32x128xf32>, vector<2x128xf32> -> vector<2x128xf32>
    %67 = arith.addf %65, %66 : vector<2x128xf32>
    %68 = vector.extract_strided_slice %67 {offsets = [0, 0], sizes = [2, 32], strides = [1, 1]} : vector<2x128xf32> to vector<2x32xf32>
    %69 = arith.negf %68 : vector<2x32xf32>
    %70 = math.exp %69 : vector<2x32xf32>
    %cst_19 = arith.constant 1.000000e+00 : f32
    %71 = vector.broadcast %cst_19 : f32 to vector<2x32xf32>
    %72 = arith.addf %71, %70 : vector<2x32xf32>
    %73 = arith.divf %71, %72 : vector<2x32xf32>
    %74 = vector.extract_strided_slice %67 {offsets = [0, 32], sizes = [2, 32], strides = [1, 1]} : vector<2x128xf32> to vector<2x32xf32>
    %75 = arith.negf %74 : vector<2x32xf32>
    %76 = math.exp %75 : vector<2x32xf32>
    %cst_20 = arith.constant 1.000000e+00 : f32
    %77 = vector.broadcast %cst_20 : f32 to vector<2x32xf32>
    %78 = arith.addf %77, %76 : vector<2x32xf32>
    %79 = arith.divf %77, %78 : vector<2x32xf32>
    %80 = vector.extract_strided_slice %67 {offsets = [0, 64], sizes = [2, 32], strides = [1, 1]} : vector<2x128xf32> to vector<2x32xf32>
    %81 = math.tanh %80 : vector<2x32xf32>
    %82 = vector.extract_strided_slice %67 {offsets = [0, 96], sizes = [2, 32], strides = [1, 1]} : vector<2x128xf32> to vector<2x32xf32>
    %83 = arith.negf %82 : vector<2x32xf32>
    %84 = math.exp %83 : vector<2x32xf32>
    %cst_21 = arith.constant 1.000000e+00 : f32
    %85 = vector.broadcast %cst_21 : f32 to vector<2x32xf32>
    %86 = arith.addf %85, %84 : vector<2x32xf32>
    %87 = arith.divf %85, %86 : vector<2x32xf32>
    %88 = arith.mulf %79, %62 : vector<2x32xf32>
    %89 = arith.mulf %73, %81 : vector<2x32xf32>
    %90 = arith.addf %88, %89 : vector<2x32xf32>
    %91 = math.tanh %90 : vector<2x32xf32>
    %92 = arith.mulf %87, %91 : vector<2x32xf32>
    %93 = vector.extract_strided_slice %8 {offsets = [6, 0], sizes = [2, 128], strides = [1, 1]} : vector<16x128xf32> to vector<2x128xf32>
    %cst_22 = arith.constant dense<0.000000e+00> : vector<2x128xf32>
    %94 = tpu.matmul %92, %0, %cst_22 {dimension_numbers = #tpu.dot_dimension_numbers<[1], [0], [0], [1], [0, 0, 1, 1], [], []>} : vector<2x32xf32>, vector<32x128xf32>, vector<2x128xf32> -> vector<2x128xf32>
    %95 = arith.addf %93, %94 : vector<2x128xf32>
    %96 = vector.extract_strided_slice %95 {offsets = [0, 0], sizes = [2, 32], strides = [1, 1]} : vector<2x128xf32> to vector<2x32xf32>
    %97 = arith.negf %96 : vector<2x32xf32>
    %98 = math.exp %97 : vector<2x32xf32>
    %cst_23 = arith.constant 1.000000e+00 : f32
    %99 = vector.broadcast %cst_23 : f32 to vector<2x32xf32>
    %100 = arith.addf %99, %98 : vector<2x32xf32>
    %101 = arith.divf %99, %100 : vector<2x32xf32>
    %102 = vector.extract_strided_slice %95 {offsets = [0, 32], sizes = [2, 32], strides = [1, 1]} : vector<2x128xf32> to vector<2x32xf32>
    %103 = arith.negf %102 : vector<2x32xf32>
    %104 = math.exp %103 : vector<2x32xf32>
    %cst_24 = arith.constant 1.000000e+00 : f32
    %105 = vector.broadcast %cst_24 : f32 to vector<2x32xf32>
    %106 = arith.addf %105, %104 : vector<2x32xf32>
    %107 = arith.divf %105, %106 : vector<2x32xf32>
    %108 = vector.extract_strided_slice %95 {offsets = [0, 64], sizes = [2, 32], strides = [1, 1]} : vector<2x128xf32> to vector<2x32xf32>
    %109 = math.tanh %108 : vector<2x32xf32>
    %110 = vector.extract_strided_slice %95 {offsets = [0, 96], sizes = [2, 32], strides = [1, 1]} : vector<2x128xf32> to vector<2x32xf32>
    %111 = arith.negf %110 : vector<2x32xf32>
    %112 = math.exp %111 : vector<2x32xf32>
    %cst_25 = arith.constant 1.000000e+00 : f32
    %113 = vector.broadcast %cst_25 : f32 to vector<2x32xf32>
    %114 = arith.addf %113, %112 : vector<2x32xf32>
    %115 = arith.divf %113, %114 : vector<2x32xf32>
    %116 = arith.mulf %107, %90 : vector<2x32xf32>
    %117 = arith.mulf %101, %109 : vector<2x32xf32>
    %118 = arith.addf %116, %117 : vector<2x32xf32>
    %119 = math.tanh %118 : vector<2x32xf32>
    %120 = arith.mulf %115, %119 : vector<2x32xf32>
    %121 = vector.extract_strided_slice %8 {offsets = [8, 0], sizes = [2, 128], strides = [1, 1]} : vector<16x128xf32> to vector<2x128xf32>
    %cst_26 = arith.constant dense<0.000000e+00> : vector<2x128xf32>
    %122 = tpu.matmul %120, %0, %cst_26 {dimension_numbers = #tpu.dot_dimension_numbers<[1], [0], [0], [1], [0, 0, 1, 1], [], []>} : vector<2x32xf32>, vector<32x128xf32>, vector<2x128xf32> -> vector<2x128xf32>
    %123 = arith.addf %121, %122 : vector<2x128xf32>
    %124 = vector.extract_strided_slice %123 {offsets = [0, 0], sizes = [2, 32], strides = [1, 1]} : vector<2x128xf32> to vector<2x32xf32>
    %125 = arith.negf %124 : vector<2x32xf32>
    %126 = math.exp %125 : vector<2x32xf32>
    %cst_27 = arith.constant 1.000000e+00 : f32
    %127 = vector.broadcast %cst_27 : f32 to vector<2x32xf32>
    %128 = arith.addf %127, %126 : vector<2x32xf32>
    %129 = arith.divf %127, %128 : vector<2x32xf32>
    %130 = vector.extract_strided_slice %123 {offsets = [0, 32], sizes = [2, 32], strides = [1, 1]} : vector<2x128xf32> to vector<2x32xf32>
    %131 = arith.negf %130 : vector<2x32xf32>
    %132 = math.exp %131 : vector<2x32xf32>
    %cst_28 = arith.constant 1.000000e+00 : f32
    %133 = vector.broadcast %cst_28 : f32 to vector<2x32xf32>
    %134 = arith.addf %133, %132 : vector<2x32xf32>
    %135 = arith.divf %133, %134 : vector<2x32xf32>
    %136 = vector.extract_strided_slice %123 {offsets = [0, 64], sizes = [2, 32], strides = [1, 1]} : vector<2x128xf32> to vector<2x32xf32>
    %137 = math.tanh %136 : vector<2x32xf32>
    %138 = vector.extract_strided_slice %123 {offsets = [0, 96], sizes = [2, 32], strides = [1, 1]} : vector<2x128xf32> to vector<2x32xf32>
    %139 = arith.negf %138 : vector<2x32xf32>
    %140 = math.exp %139 : vector<2x32xf32>
    %cst_29 = arith.constant 1.000000e+00 : f32
    %141 = vector.broadcast %cst_29 : f32 to vector<2x32xf32>
    %142 = arith.addf %141, %140 : vector<2x32xf32>
    %143 = arith.divf %141, %142 : vector<2x32xf32>
    %144 = arith.mulf %135, %118 : vector<2x32xf32>
    %145 = arith.mulf %129, %137 : vector<2x32xf32>
    %146 = arith.addf %144, %145 : vector<2x32xf32>
    %147 = math.tanh %146 : vector<2x32xf32>
    %148 = arith.mulf %143, %147 : vector<2x32xf32>
    %149 = vector.extract_strided_slice %8 {offsets = [10, 0], sizes = [2, 128], strides = [1, 1]} : vector<16x128xf32> to vector<2x128xf32>
    %cst_30 = arith.constant dense<0.000000e+00> : vector<2x128xf32>
    %150 = tpu.matmul %148, %0, %cst_30 {dimension_numbers = #tpu.dot_dimension_numbers<[1], [0], [0], [1], [0, 0, 1, 1], [], []>} : vector<2x32xf32>, vector<32x128xf32>, vector<2x128xf32> -> vector<2x128xf32>
    %151 = arith.addf %149, %150 : vector<2x128xf32>
    %152 = vector.extract_strided_slice %151 {offsets = [0, 0], sizes = [2, 32], strides = [1, 1]} : vector<2x128xf32> to vector<2x32xf32>
    %153 = arith.negf %152 : vector<2x32xf32>
    %154 = math.exp %153 : vector<2x32xf32>
    %cst_31 = arith.constant 1.000000e+00 : f32
    %155 = vector.broadcast %cst_31 : f32 to vector<2x32xf32>
    %156 = arith.addf %155, %154 : vector<2x32xf32>
    %157 = arith.divf %155, %156 : vector<2x32xf32>
    %158 = vector.extract_strided_slice %151 {offsets = [0, 32], sizes = [2, 32], strides = [1, 1]} : vector<2x128xf32> to vector<2x32xf32>
    %159 = arith.negf %158 : vector<2x32xf32>
    %160 = math.exp %159 : vector<2x32xf32>
    %cst_32 = arith.constant 1.000000e+00 : f32
    %161 = vector.broadcast %cst_32 : f32 to vector<2x32xf32>
    %162 = arith.addf %161, %160 : vector<2x32xf32>
    %163 = arith.divf %161, %162 : vector<2x32xf32>
    %164 = vector.extract_strided_slice %151 {offsets = [0, 64], sizes = [2, 32], strides = [1, 1]} : vector<2x128xf32> to vector<2x32xf32>
    %165 = math.tanh %164 : vector<2x32xf32>
    %166 = vector.extract_strided_slice %151 {offsets = [0, 96], sizes = [2, 32], strides = [1, 1]} : vector<2x128xf32> to vector<2x32xf32>
    %167 = arith.negf %166 : vector<2x32xf32>
    %168 = math.exp %167 : vector<2x32xf32>
    %cst_33 = arith.constant 1.000000e+00 : f32
    %169 = vector.broadcast %cst_33 : f32 to vector<2x32xf32>
    %170 = arith.addf %169, %168 : vector<2x32xf32>
    %171 = arith.divf %169, %170 : vector<2x32xf32>
    %172 = arith.mulf %163, %146 : vector<2x32xf32>
    %173 = arith.mulf %157, %165 : vector<2x32xf32>
    %174 = arith.addf %172, %173 : vector<2x32xf32>
    %175 = math.tanh %174 : vector<2x32xf32>
    %176 = arith.mulf %171, %175 : vector<2x32xf32>
    %177 = vector.extract_strided_slice %8 {offsets = [12, 0], sizes = [2, 128], strides = [1, 1]} : vector<16x128xf32> to vector<2x128xf32>
    %cst_34 = arith.constant dense<0.000000e+00> : vector<2x128xf32>
    %178 = tpu.matmul %176, %0, %cst_34 {dimension_numbers = #tpu.dot_dimension_numbers<[1], [0], [0], [1], [0, 0, 1, 1], [], []>} : vector<2x32xf32>, vector<32x128xf32>, vector<2x128xf32> -> vector<2x128xf32>
    %179 = arith.addf %177, %178 : vector<2x128xf32>
    %180 = vector.extract_strided_slice %179 {offsets = [0, 0], sizes = [2, 32], strides = [1, 1]} : vector<2x128xf32> to vector<2x32xf32>
    %181 = arith.negf %180 : vector<2x32xf32>
    %182 = math.exp %181 : vector<2x32xf32>
    %cst_35 = arith.constant 1.000000e+00 : f32
    %183 = vector.broadcast %cst_35 : f32 to vector<2x32xf32>
    %184 = arith.addf %183, %182 : vector<2x32xf32>
    %185 = arith.divf %183, %184 : vector<2x32xf32>
    %186 = vector.extract_strided_slice %179 {offsets = [0, 32], sizes = [2, 32], strides = [1, 1]} : vector<2x128xf32> to vector<2x32xf32>
    %187 = arith.negf %186 : vector<2x32xf32>
    %188 = math.exp %187 : vector<2x32xf32>
    %cst_36 = arith.constant 1.000000e+00 : f32
    %189 = vector.broadcast %cst_36 : f32 to vector<2x32xf32>
    %190 = arith.addf %189, %188 : vector<2x32xf32>
    %191 = arith.divf %189, %190 : vector<2x32xf32>
    %192 = vector.extract_strided_slice %179 {offsets = [0, 64], sizes = [2, 32], strides = [1, 1]} : vector<2x128xf32> to vector<2x32xf32>
    %193 = math.tanh %192 : vector<2x32xf32>
    %194 = vector.extract_strided_slice %179 {offsets = [0, 96], sizes = [2, 32], strides = [1, 1]} : vector<2x128xf32> to vector<2x32xf32>
    %195 = arith.negf %194 : vector<2x32xf32>
    %196 = math.exp %195 : vector<2x32xf32>
    %cst_37 = arith.constant 1.000000e+00 : f32
    %197 = vector.broadcast %cst_37 : f32 to vector<2x32xf32>
    %198 = arith.addf %197, %196 : vector<2x32xf32>
    %199 = arith.divf %197, %198 : vector<2x32xf32>
    %200 = arith.mulf %191, %174 : vector<2x32xf32>
    %201 = arith.mulf %185, %193 : vector<2x32xf32>
    %202 = arith.addf %200, %201 : vector<2x32xf32>
    %203 = math.tanh %202 : vector<2x32xf32>
    %204 = arith.mulf %199, %203 : vector<2x32xf32>
    %205 = vector.extract_strided_slice %8 {offsets = [14, 0], sizes = [2, 128], strides = [1, 1]} : vector<16x128xf32> to vector<2x128xf32>
    %cst_38 = arith.constant dense<0.000000e+00> : vector<2x128xf32>
    %206 = tpu.matmul %204, %0, %cst_38 {dimension_numbers = #tpu.dot_dimension_numbers<[1], [0], [0], [1], [0, 0, 1, 1], [], []>} : vector<2x32xf32>, vector<32x128xf32>, vector<2x128xf32> -> vector<2x128xf32>
    %207 = arith.addf %205, %206 : vector<2x128xf32>
    %208 = vector.extract_strided_slice %207 {offsets = [0, 0], sizes = [2, 32], strides = [1, 1]} : vector<2x128xf32> to vector<2x32xf32>
    %209 = arith.negf %208 : vector<2x32xf32>
    %210 = math.exp %209 : vector<2x32xf32>
    %cst_39 = arith.constant 1.000000e+00 : f32
    %211 = vector.broadcast %cst_39 : f32 to vector<2x32xf32>
    %212 = arith.addf %211, %210 : vector<2x32xf32>
    %213 = arith.divf %211, %212 : vector<2x32xf32>
    %214 = vector.extract_strided_slice %207 {offsets = [0, 32], sizes = [2, 32], strides = [1, 1]} : vector<2x128xf32> to vector<2x32xf32>
    %215 = arith.negf %214 : vector<2x32xf32>
    %216 = math.exp %215 : vector<2x32xf32>
    %cst_40 = arith.constant 1.000000e+00 : f32
    %217 = vector.broadcast %cst_40 : f32 to vector<2x32xf32>
    %218 = arith.addf %217, %216 : vector<2x32xf32>
    %219 = arith.divf %217, %218 : vector<2x32xf32>
    %220 = vector.extract_strided_slice %207 {offsets = [0, 64], sizes = [2, 32], strides = [1, 1]} : vector<2x128xf32> to vector<2x32xf32>
    %221 = math.tanh %220 : vector<2x32xf32>
    %222 = vector.extract_strided_slice %207 {offsets = [0, 96], sizes = [2, 32], strides = [1, 1]} : vector<2x128xf32> to vector<2x32xf32>
    %223 = arith.negf %222 : vector<2x32xf32>
    %224 = math.exp %223 : vector<2x32xf32>
    %cst_41 = arith.constant 1.000000e+00 : f32
    %225 = vector.broadcast %cst_41 : f32 to vector<2x32xf32>
    %226 = arith.addf %225, %224 : vector<2x32xf32>
    %227 = arith.divf %225, %226 : vector<2x32xf32>
    %228 = arith.mulf %219, %202 : vector<2x32xf32>
    %229 = arith.mulf %213, %221 : vector<2x32xf32>
    %230 = arith.addf %228, %229 : vector<2x32xf32>
    %231 = math.tanh %230 : vector<2x32xf32>
    %232 = arith.mulf %227, %231 : vector<2x32xf32>
    %233 = tpu.concatenate %36, %64, %92, %120, %148, %176, %204, %232 in 0 : vector<2x32xf32>, vector<2x32xf32>, vector<2x32xf32>, vector<2x32xf32>, vector<2x32xf32>, vector<2x32xf32>, vector<2x32xf32>, vector<2x32xf32> -> vector<16x32xf32>
    %c0_42 = arith.constant 0 : index
    %c0_43 = arith.constant 0 : index
    %234 = vector.load %arg4[%c0_42, %c0_43] : memref<32x128xf32, #tpu.memory_space<vmem>>, vector<32x128xf32>
    %cst_44 = arith.constant dense<0.000000e+00> : vector<16x128xf32>
    %235 = tpu.matmul %233, %234, %cst_44 {dimension_numbers = #tpu.dot_dimension_numbers<[1], [0], [0], [1], [0, 0, 1, 1], [], []>} : vector<16x32xf32>, vector<32x128xf32>, vector<16x128xf32> -> vector<16x128xf32>
    %c0_45 = arith.constant 0 : index
    %c0_46 = arith.constant 0 : index
    %236 = vector.load %arg6[%c0_45, %c0_46] : memref<1x128xf32, #tpu.memory_space<vmem>>, vector<1x128xf32>
    %237 = vector.broadcast %236 : vector<1x128xf32> to vector<16x128xf32>
    %238 = arith.addf %235, %237 : vector<16x128xf32>
    %239 = vector.extract_strided_slice %238 {offsets = [0, 0], sizes = [2, 128], strides = [1, 1]} : vector<16x128xf32> to vector<2x128xf32>
    %cst_47 = arith.constant dense<0.000000e+00> : vector<2x128xf32>
    %240 = tpu.matmul %2, %1, %cst_47 {dimension_numbers = #tpu.dot_dimension_numbers<[1], [0], [0], [1], [0, 0, 1, 1], [], []>} : vector<2x32xf32>, vector<32x128xf32>, vector<2x128xf32> -> vector<2x128xf32>
    %241 = arith.addf %239, %240 : vector<2x128xf32>
    %242 = vector.extract_strided_slice %241 {offsets = [0, 0], sizes = [2, 32], strides = [1, 1]} : vector<2x128xf32> to vector<2x32xf32>
    %243 = arith.negf %242 : vector<2x32xf32>
    %244 = math.exp %243 : vector<2x32xf32>
    %cst_48 = arith.constant 1.000000e+00 : f32
    %245 = vector.broadcast %cst_48 : f32 to vector<2x32xf32>
    %246 = arith.addf %245, %244 : vector<2x32xf32>
    %247 = arith.divf %245, %246 : vector<2x32xf32>
    %248 = vector.extract_strided_slice %241 {offsets = [0, 32], sizes = [2, 32], strides = [1, 1]} : vector<2x128xf32> to vector<2x32xf32>
    %249 = arith.negf %248 : vector<2x32xf32>
    %250 = math.exp %249 : vector<2x32xf32>
    %cst_49 = arith.constant 1.000000e+00 : f32
    %251 = vector.broadcast %cst_49 : f32 to vector<2x32xf32>
    %252 = arith.addf %251, %250 : vector<2x32xf32>
    %253 = arith.divf %251, %252 : vector<2x32xf32>
    %254 = vector.extract_strided_slice %241 {offsets = [0, 64], sizes = [2, 32], strides = [1, 1]} : vector<2x128xf32> to vector<2x32xf32>
    %255 = math.tanh %254 : vector<2x32xf32>
    %256 = vector.extract_strided_slice %241 {offsets = [0, 96], sizes = [2, 32], strides = [1, 1]} : vector<2x128xf32> to vector<2x32xf32>
    %257 = arith.negf %256 : vector<2x32xf32>
    %258 = math.exp %257 : vector<2x32xf32>
    %cst_50 = arith.constant 1.000000e+00 : f32
    %259 = vector.broadcast %cst_50 : f32 to vector<2x32xf32>
    %260 = arith.addf %259, %258 : vector<2x32xf32>
    %261 = arith.divf %259, %260 : vector<2x32xf32>
    %262 = arith.mulf %253, %2 : vector<2x32xf32>
    %263 = arith.mulf %247, %255 : vector<2x32xf32>
    %264 = arith.addf %262, %263 : vector<2x32xf32>
    %265 = math.tanh %264 : vector<2x32xf32>
    %266 = arith.mulf %261, %265 : vector<2x32xf32>
    %267 = vector.extract_strided_slice %238 {offsets = [2, 0], sizes = [2, 128], strides = [1, 1]} : vector<16x128xf32> to vector<2x128xf32>
    %cst_51 = arith.constant dense<0.000000e+00> : vector<2x128xf32>
    %268 = tpu.matmul %266, %1, %cst_51 {dimension_numbers = #tpu.dot_dimension_numbers<[1], [0], [0], [1], [0, 0, 1, 1], [], []>} : vector<2x32xf32>, vector<32x128xf32>, vector<2x128xf32> -> vector<2x128xf32>
    %269 = arith.addf %267, %268 : vector<2x128xf32>
    %270 = vector.extract_strided_slice %269 {offsets = [0, 0], sizes = [2, 32], strides = [1, 1]} : vector<2x128xf32> to vector<2x32xf32>
    %271 = arith.negf %270 : vector<2x32xf32>
    %272 = math.exp %271 : vector<2x32xf32>
    %cst_52 = arith.constant 1.000000e+00 : f32
    %273 = vector.broadcast %cst_52 : f32 to vector<2x32xf32>
    %274 = arith.addf %273, %272 : vector<2x32xf32>
    %275 = arith.divf %273, %274 : vector<2x32xf32>
    %276 = vector.extract_strided_slice %269 {offsets = [0, 32], sizes = [2, 32], strides = [1, 1]} : vector<2x128xf32> to vector<2x32xf32>
    %277 = arith.negf %276 : vector<2x32xf32>
    %278 = math.exp %277 : vector<2x32xf32>
    %cst_53 = arith.constant 1.000000e+00 : f32
    %279 = vector.broadcast %cst_53 : f32 to vector<2x32xf32>
    %280 = arith.addf %279, %278 : vector<2x32xf32>
    %281 = arith.divf %279, %280 : vector<2x32xf32>
    %282 = vector.extract_strided_slice %269 {offsets = [0, 64], sizes = [2, 32], strides = [1, 1]} : vector<2x128xf32> to vector<2x32xf32>
    %283 = math.tanh %282 : vector<2x32xf32>
    %284 = vector.extract_strided_slice %269 {offsets = [0, 96], sizes = [2, 32], strides = [1, 1]} : vector<2x128xf32> to vector<2x32xf32>
    %285 = arith.negf %284 : vector<2x32xf32>
    %286 = math.exp %285 : vector<2x32xf32>
    %cst_54 = arith.constant 1.000000e+00 : f32
    %287 = vector.broadcast %cst_54 : f32 to vector<2x32xf32>
    %288 = arith.addf %287, %286 : vector<2x32xf32>
    %289 = arith.divf %287, %288 : vector<2x32xf32>
    %290 = arith.mulf %281, %264 : vector<2x32xf32>
    %291 = arith.mulf %275, %283 : vector<2x32xf32>
    %292 = arith.addf %290, %291 : vector<2x32xf32>
    %293 = math.tanh %292 : vector<2x32xf32>
    %294 = arith.mulf %289, %293 : vector<2x32xf32>
    %295 = vector.extract_strided_slice %238 {offsets = [4, 0], sizes = [2, 128], strides = [1, 1]} : vector<16x128xf32> to vector<2x128xf32>
    %cst_55 = arith.constant dense<0.000000e+00> : vector<2x128xf32>
    %296 = tpu.matmul %294, %1, %cst_55 {dimension_numbers = #tpu.dot_dimension_numbers<[1], [0], [0], [1], [0, 0, 1, 1], [], []>} : vector<2x32xf32>, vector<32x128xf32>, vector<2x128xf32> -> vector<2x128xf32>
    %297 = arith.addf %295, %296 : vector<2x128xf32>
    %298 = vector.extract_strided_slice %297 {offsets = [0, 0], sizes = [2, 32], strides = [1, 1]} : vector<2x128xf32> to vector<2x32xf32>
    %299 = arith.negf %298 : vector<2x32xf32>
    %300 = math.exp %299 : vector<2x32xf32>
    %cst_56 = arith.constant 1.000000e+00 : f32
    %301 = vector.broadcast %cst_56 : f32 to vector<2x32xf32>
    %302 = arith.addf %301, %300 : vector<2x32xf32>
    %303 = arith.divf %301, %302 : vector<2x32xf32>
    %304 = vector.extract_strided_slice %297 {offsets = [0, 32], sizes = [2, 32], strides = [1, 1]} : vector<2x128xf32> to vector<2x32xf32>
    %305 = arith.negf %304 : vector<2x32xf32>
    %306 = math.exp %305 : vector<2x32xf32>
    %cst_57 = arith.constant 1.000000e+00 : f32
    %307 = vector.broadcast %cst_57 : f32 to vector<2x32xf32>
    %308 = arith.addf %307, %306 : vector<2x32xf32>
    %309 = arith.divf %307, %308 : vector<2x32xf32>
    %310 = vector.extract_strided_slice %297 {offsets = [0, 64], sizes = [2, 32], strides = [1, 1]} : vector<2x128xf32> to vector<2x32xf32>
    %311 = math.tanh %310 : vector<2x32xf32>
    %312 = vector.extract_strided_slice %297 {offsets = [0, 96], sizes = [2, 32], strides = [1, 1]} : vector<2x128xf32> to vector<2x32xf32>
    %313 = arith.negf %312 : vector<2x32xf32>
    %314 = math.exp %313 : vector<2x32xf32>
    %cst_58 = arith.constant 1.000000e+00 : f32
    %315 = vector.broadcast %cst_58 : f32 to vector<2x32xf32>
    %316 = arith.addf %315, %314 : vector<2x32xf32>
    %317 = arith.divf %315, %316 : vector<2x32xf32>
    %318 = arith.mulf %309, %292 : vector<2x32xf32>
    %319 = arith.mulf %303, %311 : vector<2x32xf32>
    %320 = arith.addf %318, %319 : vector<2x32xf32>
    %321 = math.tanh %320 : vector<2x32xf32>
    %322 = arith.mulf %317, %321 : vector<2x32xf32>
    %323 = vector.extract_strided_slice %238 {offsets = [6, 0], sizes = [2, 128], strides = [1, 1]} : vector<16x128xf32> to vector<2x128xf32>
    %cst_59 = arith.constant dense<0.000000e+00> : vector<2x128xf32>
    %324 = tpu.matmul %322, %1, %cst_59 {dimension_numbers = #tpu.dot_dimension_numbers<[1], [0], [0], [1], [0, 0, 1, 1], [], []>} : vector<2x32xf32>, vector<32x128xf32>, vector<2x128xf32> -> vector<2x128xf32>
    %325 = arith.addf %323, %324 : vector<2x128xf32>
    %326 = vector.extract_strided_slice %325 {offsets = [0, 0], sizes = [2, 32], strides = [1, 1]} : vector<2x128xf32> to vector<2x32xf32>
    %327 = arith.negf %326 : vector<2x32xf32>
    %328 = math.exp %327 : vector<2x32xf32>
    %cst_60 = arith.constant 1.000000e+00 : f32
    %329 = vector.broadcast %cst_60 : f32 to vector<2x32xf32>
    %330 = arith.addf %329, %328 : vector<2x32xf32>
    %331 = arith.divf %329, %330 : vector<2x32xf32>
    %332 = vector.extract_strided_slice %325 {offsets = [0, 32], sizes = [2, 32], strides = [1, 1]} : vector<2x128xf32> to vector<2x32xf32>
    %333 = arith.negf %332 : vector<2x32xf32>
    %334 = math.exp %333 : vector<2x32xf32>
    %cst_61 = arith.constant 1.000000e+00 : f32
    %335 = vector.broadcast %cst_61 : f32 to vector<2x32xf32>
    %336 = arith.addf %335, %334 : vector<2x32xf32>
    %337 = arith.divf %335, %336 : vector<2x32xf32>
    %338 = vector.extract_strided_slice %325 {offsets = [0, 64], sizes = [2, 32], strides = [1, 1]} : vector<2x128xf32> to vector<2x32xf32>
    %339 = math.tanh %338 : vector<2x32xf32>
    %340 = vector.extract_strided_slice %325 {offsets = [0, 96], sizes = [2, 32], strides = [1, 1]} : vector<2x128xf32> to vector<2x32xf32>
    %341 = arith.negf %340 : vector<2x32xf32>
    %342 = math.exp %341 : vector<2x32xf32>
    %cst_62 = arith.constant 1.000000e+00 : f32
    %343 = vector.broadcast %cst_62 : f32 to vector<2x32xf32>
    %344 = arith.addf %343, %342 : vector<2x32xf32>
    %345 = arith.divf %343, %344 : vector<2x32xf32>
    %346 = arith.mulf %337, %320 : vector<2x32xf32>
    %347 = arith.mulf %331, %339 : vector<2x32xf32>
    %348 = arith.addf %346, %347 : vector<2x32xf32>
    %349 = math.tanh %348 : vector<2x32xf32>
    %350 = arith.mulf %345, %349 : vector<2x32xf32>
    %351 = vector.extract_strided_slice %238 {offsets = [8, 0], sizes = [2, 128], strides = [1, 1]} : vector<16x128xf32> to vector<2x128xf32>
    %cst_63 = arith.constant dense<0.000000e+00> : vector<2x128xf32>
    %352 = tpu.matmul %350, %1, %cst_63 {dimension_numbers = #tpu.dot_dimension_numbers<[1], [0], [0], [1], [0, 0, 1, 1], [], []>} : vector<2x32xf32>, vector<32x128xf32>, vector<2x128xf32> -> vector<2x128xf32>
    %353 = arith.addf %351, %352 : vector<2x128xf32>
    %354 = vector.extract_strided_slice %353 {offsets = [0, 0], sizes = [2, 32], strides = [1, 1]} : vector<2x128xf32> to vector<2x32xf32>
    %355 = arith.negf %354 : vector<2x32xf32>
    %356 = math.exp %355 : vector<2x32xf32>
    %cst_64 = arith.constant 1.000000e+00 : f32
    %357 = vector.broadcast %cst_64 : f32 to vector<2x32xf32>
    %358 = arith.addf %357, %356 : vector<2x32xf32>
    %359 = arith.divf %357, %358 : vector<2x32xf32>
    %360 = vector.extract_strided_slice %353 {offsets = [0, 32], sizes = [2, 32], strides = [1, 1]} : vector<2x128xf32> to vector<2x32xf32>
    %361 = arith.negf %360 : vector<2x32xf32>
    %362 = math.exp %361 : vector<2x32xf32>
    %cst_65 = arith.constant 1.000000e+00 : f32
    %363 = vector.broadcast %cst_65 : f32 to vector<2x32xf32>
    %364 = arith.addf %363, %362 : vector<2x32xf32>
    %365 = arith.divf %363, %364 : vector<2x32xf32>
    %366 = vector.extract_strided_slice %353 {offsets = [0, 64], sizes = [2, 32], strides = [1, 1]} : vector<2x128xf32> to vector<2x32xf32>
    %367 = math.tanh %366 : vector<2x32xf32>
    %368 = vector.extract_strided_slice %353 {offsets = [0, 96], sizes = [2, 32], strides = [1, 1]} : vector<2x128xf32> to vector<2x32xf32>
    %369 = arith.negf %368 : vector<2x32xf32>
    %370 = math.exp %369 : vector<2x32xf32>
    %cst_66 = arith.constant 1.000000e+00 : f32
    %371 = vector.broadcast %cst_66 : f32 to vector<2x32xf32>
    %372 = arith.addf %371, %370 : vector<2x32xf32>
    %373 = arith.divf %371, %372 : vector<2x32xf32>
    %374 = arith.mulf %365, %348 : vector<2x32xf32>
    %375 = arith.mulf %359, %367 : vector<2x32xf32>
    %376 = arith.addf %374, %375 : vector<2x32xf32>
    %377 = math.tanh %376 : vector<2x32xf32>
    %378 = arith.mulf %373, %377 : vector<2x32xf32>
    %379 = vector.extract_strided_slice %238 {offsets = [10, 0], sizes = [2, 128], strides = [1, 1]} : vector<16x128xf32> to vector<2x128xf32>
    %cst_67 = arith.constant dense<0.000000e+00> : vector<2x128xf32>
    %380 = tpu.matmul %378, %1, %cst_67 {dimension_numbers = #tpu.dot_dimension_numbers<[1], [0], [0], [1], [0, 0, 1, 1], [], []>} : vector<2x32xf32>, vector<32x128xf32>, vector<2x128xf32> -> vector<2x128xf32>
    %381 = arith.addf %379, %380 : vector<2x128xf32>
    %382 = vector.extract_strided_slice %381 {offsets = [0, 0], sizes = [2, 32], strides = [1, 1]} : vector<2x128xf32> to vector<2x32xf32>
    %383 = arith.negf %382 : vector<2x32xf32>
    %384 = math.exp %383 : vector<2x32xf32>
    %cst_68 = arith.constant 1.000000e+00 : f32
    %385 = vector.broadcast %cst_68 : f32 to vector<2x32xf32>
    %386 = arith.addf %385, %384 : vector<2x32xf32>
    %387 = arith.divf %385, %386 : vector<2x32xf32>
    %388 = vector.extract_strided_slice %381 {offsets = [0, 32], sizes = [2, 32], strides = [1, 1]} : vector<2x128xf32> to vector<2x32xf32>
    %389 = arith.negf %388 : vector<2x32xf32>
    %390 = math.exp %389 : vector<2x32xf32>
    %cst_69 = arith.constant 1.000000e+00 : f32
    %391 = vector.broadcast %cst_69 : f32 to vector<2x32xf32>
    %392 = arith.addf %391, %390 : vector<2x32xf32>
    %393 = arith.divf %391, %392 : vector<2x32xf32>
    %394 = vector.extract_strided_slice %381 {offsets = [0, 64], sizes = [2, 32], strides = [1, 1]} : vector<2x128xf32> to vector<2x32xf32>
    %395 = math.tanh %394 : vector<2x32xf32>
    %396 = vector.extract_strided_slice %381 {offsets = [0, 96], sizes = [2, 32], strides = [1, 1]} : vector<2x128xf32> to vector<2x32xf32>
    %397 = arith.negf %396 : vector<2x32xf32>
    %398 = math.exp %397 : vector<2x32xf32>
    %cst_70 = arith.constant 1.000000e+00 : f32
    %399 = vector.broadcast %cst_70 : f32 to vector<2x32xf32>
    %400 = arith.addf %399, %398 : vector<2x32xf32>
    %401 = arith.divf %399, %400 : vector<2x32xf32>
    %402 = arith.mulf %393, %376 : vector<2x32xf32>
    %403 = arith.mulf %387, %395 : vector<2x32xf32>
    %404 = arith.addf %402, %403 : vector<2x32xf32>
    %405 = math.tanh %404 : vector<2x32xf32>
    %406 = arith.mulf %401, %405 : vector<2x32xf32>
    %407 = vector.extract_strided_slice %238 {offsets = [12, 0], sizes = [2, 128], strides = [1, 1]} : vector<16x128xf32> to vector<2x128xf32>
    %cst_71 = arith.constant dense<0.000000e+00> : vector<2x128xf32>
    %408 = tpu.matmul %406, %1, %cst_71 {dimension_numbers = #tpu.dot_dimension_numbers<[1], [0], [0], [1], [0, 0, 1, 1], [], []>} : vector<2x32xf32>, vector<32x128xf32>, vector<2x128xf32> -> vector<2x128xf32>
    %409 = arith.addf %407, %408 : vector<2x128xf32>
    %410 = vector.extract_strided_slice %409 {offsets = [0, 0], sizes = [2, 32], strides = [1, 1]} : vector<2x128xf32> to vector<2x32xf32>
    %411 = arith.negf %410 : vector<2x32xf32>
    %412 = math.exp %411 : vector<2x32xf32>
    %cst_72 = arith.constant 1.000000e+00 : f32
    %413 = vector.broadcast %cst_72 : f32 to vector<2x32xf32>
    %414 = arith.addf %413, %412 : vector<2x32xf32>
    %415 = arith.divf %413, %414 : vector<2x32xf32>
    %416 = vector.extract_strided_slice %409 {offsets = [0, 32], sizes = [2, 32], strides = [1, 1]} : vector<2x128xf32> to vector<2x32xf32>
    %417 = arith.negf %416 : vector<2x32xf32>
    %418 = math.exp %417 : vector<2x32xf32>
    %cst_73 = arith.constant 1.000000e+00 : f32
    %419 = vector.broadcast %cst_73 : f32 to vector<2x32xf32>
    %420 = arith.addf %419, %418 : vector<2x32xf32>
    %421 = arith.divf %419, %420 : vector<2x32xf32>
    %422 = vector.extract_strided_slice %409 {offsets = [0, 64], sizes = [2, 32], strides = [1, 1]} : vector<2x128xf32> to vector<2x32xf32>
    %423 = math.tanh %422 : vector<2x32xf32>
    %424 = vector.extract_strided_slice %409 {offsets = [0, 96], sizes = [2, 32], strides = [1, 1]} : vector<2x128xf32> to vector<2x32xf32>
    %425 = arith.negf %424 : vector<2x32xf32>
    %426 = math.exp %425 : vector<2x32xf32>
    %cst_74 = arith.constant 1.000000e+00 : f32
    %427 = vector.broadcast %cst_74 : f32 to vector<2x32xf32>
    %428 = arith.addf %427, %426 : vector<2x32xf32>
    %429 = arith.divf %427, %428 : vector<2x32xf32>
    %430 = arith.mulf %421, %404 : vector<2x32xf32>
    %431 = arith.mulf %415, %423 : vector<2x32xf32>
    %432 = arith.addf %430, %431 : vector<2x32xf32>
    %433 = math.tanh %432 : vector<2x32xf32>
    %434 = arith.mulf %429, %433 : vector<2x32xf32>
    %435 = vector.extract_strided_slice %238 {offsets = [14, 0], sizes = [2, 128], strides = [1, 1]} : vector<16x128xf32> to vector<2x128xf32>
    %cst_75 = arith.constant dense<0.000000e+00> : vector<2x128xf32>
    %436 = tpu.matmul %434, %1, %cst_75 {dimension_numbers = #tpu.dot_dimension_numbers<[1], [0], [0], [1], [0, 0, 1, 1], [], []>} : vector<2x32xf32>, vector<32x128xf32>, vector<2x128xf32> -> vector<2x128xf32>
    %437 = arith.addf %435, %436 : vector<2x128xf32>
    %438 = vector.extract_strided_slice %437 {offsets = [0, 0], sizes = [2, 32], strides = [1, 1]} : vector<2x128xf32> to vector<2x32xf32>
    %439 = arith.negf %438 : vector<2x32xf32>
    %440 = math.exp %439 : vector<2x32xf32>
    %cst_76 = arith.constant 1.000000e+00 : f32
    %441 = vector.broadcast %cst_76 : f32 to vector<2x32xf32>
    %442 = arith.addf %441, %440 : vector<2x32xf32>
    %443 = arith.divf %441, %442 : vector<2x32xf32>
    %444 = vector.extract_strided_slice %437 {offsets = [0, 32], sizes = [2, 32], strides = [1, 1]} : vector<2x128xf32> to vector<2x32xf32>
    %445 = arith.negf %444 : vector<2x32xf32>
    %446 = math.exp %445 : vector<2x32xf32>
    %cst_77 = arith.constant 1.000000e+00 : f32
    %447 = vector.broadcast %cst_77 : f32 to vector<2x32xf32>
    %448 = arith.addf %447, %446 : vector<2x32xf32>
    %449 = arith.divf %447, %448 : vector<2x32xf32>
    %450 = vector.extract_strided_slice %437 {offsets = [0, 64], sizes = [2, 32], strides = [1, 1]} : vector<2x128xf32> to vector<2x32xf32>
    %451 = math.tanh %450 : vector<2x32xf32>
    %452 = vector.extract_strided_slice %437 {offsets = [0, 96], sizes = [2, 32], strides = [1, 1]} : vector<2x128xf32> to vector<2x32xf32>
    %453 = arith.negf %452 : vector<2x32xf32>
    %454 = math.exp %453 : vector<2x32xf32>
    %cst_78 = arith.constant 1.000000e+00 : f32
    %455 = vector.broadcast %cst_78 : f32 to vector<2x32xf32>
    %456 = arith.addf %455, %454 : vector<2x32xf32>
    %457 = arith.divf %455, %456 : vector<2x32xf32>
    %458 = arith.mulf %449, %432 : vector<2x32xf32>
    %459 = arith.mulf %443, %451 : vector<2x32xf32>
    %460 = arith.addf %458, %459 : vector<2x32xf32>
    %461 = math.tanh %460 : vector<2x32xf32>
    %462 = arith.mulf %457, %461 : vector<2x32xf32>
    %463 = tpu.concatenate %266, %294, %322, %350, %378, %406, %434, %462 in 0 : vector<2x32xf32>, vector<2x32xf32>, vector<2x32xf32>, vector<2x32xf32>, vector<2x32xf32>, vector<2x32xf32>, vector<2x32xf32>, vector<2x32xf32> -> vector<16x32xf32>
    %c0_79 = arith.constant 0 : index
    %c0_80 = arith.constant 0 : index
    %c0_81 = arith.constant 0 : index
    %464 = vector.load %arg10[%c0_79, %c0_80, %c0_81] : memref<2x2x32xf32, #tpu.memory_space<vmem>>, vector<1x2x32xf32>
    %465 = vector.shape_cast %464 : vector<1x2x32xf32> to vector<2x32xf32>
    %466 = vector.shape_cast %232 : vector<2x32xf32> to vector<1x2x32xf32>
    tpu.vector_store %arg10[%c0_79, %c0_80, %c0_81], %466 {strides = array<i32>} : memref<2x2x32xf32, #tpu.memory_space<vmem>>, vector<1x2x32xf32>,
    %c1 = arith.constant 1 : index
    %c0_82 = arith.constant 0 : index
    %c0_83 = arith.constant 0 : index
    %467 = vector.load %arg10[%c1, %c0_82, %c0_83] : memref<2x2x32xf32, #tpu.memory_space<vmem>>, vector<1x2x32xf32>
    %468 = vector.shape_cast %467 : vector<1x2x32xf32> to vector<2x32xf32>
    %469 = vector.shape_cast %462 : vector<2x32xf32> to vector<1x2x32xf32>
    tpu.vector_store %arg10[%c1, %c0_82, %c0_83], %469 {strides = array<i32>} : memref<2x2x32xf32, #tpu.memory_space<vmem>>, vector<1x2x32xf32>,
    %c0_84 = arith.constant 0 : index
    %c0_85 = arith.constant 0 : index
    %c0_86 = arith.constant 0 : index
    %470 = vector.load %arg11[%c0_84, %c0_85, %c0_86] : memref<2x2x32xf32, #tpu.memory_space<vmem>>, vector<1x2x32xf32>
    %471 = vector.shape_cast %470 : vector<1x2x32xf32> to vector<2x32xf32>
    %472 = vector.shape_cast %230 : vector<2x32xf32> to vector<1x2x32xf32>
    tpu.vector_store %arg11[%c0_84, %c0_85, %c0_86], %472 {strides = array<i32>} : memref<2x2x32xf32, #tpu.memory_space<vmem>>, vector<1x2x32xf32>,
    %c1_87 = arith.constant 1 : index
    %c0_88 = arith.constant 0 : index
    %c0_89 = arith.constant 0 : index
    %473 = vector.load %arg11[%c1_87, %c0_88, %c0_89] : memref<2x2x32xf32, #tpu.memory_space<vmem>>, vector<1x2x32xf32>
    %474 = vector.shape_cast %473 : vector<1x2x32xf32> to vector<2x32xf32>
    %475 = vector.shape_cast %460 : vector<2x32xf32> to vector<1x2x32xf32>
    tpu.vector_store %arg11[%c1_87, %c0_88, %c0_89], %475 {strides = array<i32>} : memref<2x2x32xf32, #tpu.memory_space<vmem>>, vector<1x2x32xf32>,
    %c0_90 = arith.constant 0 : index
    %c0_91 = arith.constant 0 : index
    %476 = vector.load %arg7[%c0_90, %c0_91] : memref<32x2xf32, #tpu.memory_space<vmem>>, vector<32x2xf32>
    %cst_92 = arith.constant dense<0.000000e+00> : vector<16x2xf32>
    %477 = tpu.matmul %463, %476, %cst_92 {dimension_numbers = #tpu.dot_dimension_numbers<[1], [0], [0], [1], [0, 0, 1, 1], [], []>} : vector<16x32xf32>, vector<32x2xf32>, vector<16x2xf32> -> vector<16x2xf32>
    %c0_93 = arith.constant 0 : index
    %c0_94 = arith.constant 0 : index
    %478 = vector.load %arg8[%c0_93, %c0_94] : memref<1x2xf32, #tpu.memory_space<vmem>>, vector<1x2xf32>
    %479 = vector.broadcast %478 : vector<1x2xf32> to vector<16x2xf32>
    %480 = arith.addf %477, %479 : vector<16x2xf32>
    %481 = vector.extract_strided_slice %480 {offsets = [0, 0], sizes = [2, 2], strides = [1, 1]} : vector<16x2xf32> to vector<2x2xf32>
    %482 = vector.extract_strided_slice %480 {offsets = [2, 0], sizes = [2, 2], strides = [1, 1]} : vector<16x2xf32> to vector<2x2xf32>
    %483 = vector.extract_strided_slice %480 {offsets = [4, 0], sizes = [2, 2], strides = [1, 1]} : vector<16x2xf32> to vector<2x2xf32>
    %484 = vector.extract_strided_slice %480 {offsets = [6, 0], sizes = [2, 2], strides = [1, 1]} : vector<16x2xf32> to vector<2x2xf32>
    %485 = vector.extract_strided_slice %480 {offsets = [8, 0], sizes = [2, 2], strides = [1, 1]} : vector<16x2xf32> to vector<2x2xf32>
    %486 = vector.extract_strided_slice %480 {offsets = [10, 0], sizes = [2, 2], strides = [1, 1]} : vector<16x2xf32> to vector<2x2xf32>
    %487 = vector.extract_strided_slice %480 {offsets = [12, 0], sizes = [2, 2], strides = [1, 1]} : vector<16x2xf32> to vector<2x2xf32>
    %488 = vector.extract_strided_slice %480 {offsets = [14, 0], sizes = [2, 2], strides = [1, 1]} : vector<16x2xf32> to vector<2x2xf32>
    %489 = arith.maximumf %481, %482 : vector<2x2xf32>
    %490 = arith.maximumf %489, %483 : vector<2x2xf32>
    %491 = arith.maximumf %490, %484 : vector<2x2xf32>
    %492 = arith.maximumf %491, %485 : vector<2x2xf32>
    %493 = arith.maximumf %492, %486 : vector<2x2xf32>
    %494 = arith.maximumf %493, %487 : vector<2x2xf32>
    %495 = arith.maximumf %494, %488 : vector<2x2xf32>
    %496 = arith.subf %481, %495 : vector<2x2xf32>
    %497 = math.exp %496 : vector<2x2xf32>
    %498 = arith.subf %482, %495 : vector<2x2xf32>
    %499 = math.exp %498 : vector<2x2xf32>
    %500 = arith.subf %483, %495 : vector<2x2xf32>
    %501 = math.exp %500 : vector<2x2xf32>
    %502 = arith.subf %484, %495 : vector<2x2xf32>
    %503 = math.exp %502 : vector<2x2xf32>
    %504 = arith.subf %485, %495 : vector<2x2xf32>
    %505 = math.exp %504 : vector<2x2xf32>
    %506 = arith.subf %486, %495 : vector<2x2xf32>
    %507 = math.exp %506 : vector<2x2xf32>
    %508 = arith.subf %487, %495 : vector<2x2xf32>
    %509 = math.exp %508 : vector<2x2xf32>
    %510 = arith.subf %488, %495 : vector<2x2xf32>
    %511 = math.exp %510 : vector<2x2xf32>
    %512 = arith.addf %497, %499 : vector<2x2xf32>
    %513 = arith.addf %512, %501 : vector<2x2xf32>
    %514 = arith.addf %513, %503 : vector<2x2xf32>
    %515 = arith.addf %514, %505 : vector<2x2xf32>
    %516 = arith.addf %515, %507 : vector<2x2xf32>
    %517 = arith.addf %516, %509 : vector<2x2xf32>
    %518 = arith.addf %517, %511 : vector<2x2xf32>
    %519 = math.log %518 : vector<2x2xf32>
    %520 = arith.addf %519, %495 : vector<2x2xf32>
    %521 = arith.subf %481, %520 : vector<2x2xf32>
    %522 = arith.subf %482, %520 : vector<2x2xf32>
    %523 = arith.subf %483, %520 : vector<2x2xf32>
    %524 = arith.subf %484, %520 : vector<2x2xf32>
    %525 = arith.subf %485, %520 : vector<2x2xf32>
    %526 = arith.subf %486, %520 : vector<2x2xf32>
    %527 = arith.subf %487, %520 : vector<2x2xf32>
    %528 = arith.subf %488, %520 : vector<2x2xf32>
    %529 = tpu.concatenate %521, %522, %523, %524, %525, %526, %527, %528 in 0 : vector<2x2xf32>, vector<2x2xf32>, vector<2x2xf32>, vector<2x2xf32>, vector<2x2xf32>, vector<2x2xf32>, vector<2x2xf32>, vector<2x2xf32> -> vector<16x2xf32>
    %c0_95 = arith.constant 0 : index
    %c0_96 = arith.constant 0 : index
    %530 = vector.load %arg9[%c0_95, %c0_96] : memref<16x2xf32, #tpu.memory_space<vmem>>, vector<16x2xf32>
    tpu.vector_store %arg9[%c0_95, %c0_96], %529 {strides = array<i32>} : memref<16x2xf32, #tpu.memory_space<vmem>>, vector<16x2xf32>,
    return
  }
}

</mosaic_0001>

<llo_original>
// kernel: discriminator_forward.1
$region0: #{discriminator_forward.1}
  #allocation0 [shape = 'u32[]', space=smem, size = 0x4, offset = 0x4, fixed_abs, tag = 'smem constant byte address 0x4 - core index']
  #allocation1 [shape = 'u32[72,128]{1,0:T(1,128)}', space=vmem, size = 0x9000, scoped, tag = 'internal scratch']
  %s0 = inlined_call_operand.vmem [shape: f32[16,4], index: 0, kind: input, shape index: {}]
  %s1 = inlined_call_operand.vmem [shape: f32[4,128], index: 1, kind: input, shape index: {}]
  %s2 = inlined_call_operand.vmem [shape: f32[32,128], index: 2, kind: input, shape index: {}]
  %s3 = inlined_call_operand.vmem [shape: f32[1,128], index: 3, kind: input, shape index: {}]
  %s4 = inlined_call_operand.hbm [shape: f32[32,128], index: 4, kind: input, shape index: {}]
  %s5 = inlined_call_operand.hbm [shape: f32[32,128], index: 5, kind: input, shape index: {}]
  %s6 = inlined_call_operand.vmem [shape: f32[1,128], index: 6, kind: input, shape index: {}]
  %s7 = inlined_call_operand.vmem [shape: f32[32,2], index: 7, kind: input, shape index: {}]
  %s8 = inlined_call_operand.vmem [shape: f32[1,2], index: 8, kind: input, shape index: {}]
  %s9 = inlined_call_operand.vmem [shape: f32[16,2], index: 9, kind: output, shape index: {0}]
  %s10 = inlined_call_operand.hbm [shape: f32[2,2,32], index: 10, kind: output, shape index: {1}]
  %s11 = inlined_call_operand.hbm [shape: f32[2,2,32], index: 11, kind: output, shape index: {2}]
  %12 = xla_tuple %s9, %s10, %s11
  %s13 = sld [smem:[#allocation0]]
  $region70: #{discriminator_forward.1} parent=0
    _
  %s15 = ssub.s32 1, %s13
  %s16 = scalar_select 0, %s15, %s13
  $region1: #{discriminator_forward.1} parent=0
    #allocation2 [shape = 'u8[16384]{0}', space=vmem, size = 0x4000, scoped, tag = 'input window, operand 4, single buffered']
    #allocation3 [shape = 's32[1]{0}', space=sflag, size = 0x4, scoped, tag = 'scoped memory for discriminator_forward.1']
    #allocation4 [shape = 's32[1]{0}', space=sflag, size = 0x4, scoped, tag = 'scoped memory for discriminator_forward.1']
    #allocation5 [shape = 'u8[16384]{0}', space=vmem, size = 0x4000, scoped, tag = 'input window, operand 5, single buffered']
    #allocation6 [shape = 's32[1]{0}', space=sflag, size = 0x4, scoped, tag = 'scoped memory for discriminator_forward.1']
    #allocation7 [shape = 'u8[2048]{0}', space=vmem, size = 0x800, scoped, tag = 'output window, operand 1, single buffered']
    #allocation8 [shape = 'u8[2048]{0}', space=vmem, size = 0x800, scoped, tag = 'output window, operand 2, single buffered']
    #allocation9 [shape = 's32[1]{0}', space=sflag, size = 0x4, scoped, tag = 'scoped memory for discriminator_forward.1']
    %17 = vsyncpa [#allocation3], 0
    %18 = vsyncpa [#allocation6], 0
    %19 = vsyncpa [#allocation4], 0
    %20 = vsyncpa [#allocation9], 0
    // Predicated region
    $region2: #{discriminator_forward.1} parent=1 // pred_check
      _
    $region3: #{discriminator_forward.1} parent=1 // pred_check_branch
      %22 = sbr.rel (0) target = $region5
    $region4: #{discriminator_forward.1} parent=1 // pred_region
      _
    $region5: #{discriminator_forward.1} parent=1 // pred_fallthru
      _
    // Predicated region
    $region6: #{discriminator_forward.1} parent=1 // pred_check
      _
    $region7: #{discriminator_forward.1} parent=1 // pred_check_branch
      %24 = sbr.rel (0) target = $region9
    $region8: #{discriminator_forward.1} parent=1 // pred_region
      _
    $region9: #{discriminator_forward.1} parent=1 // pred_fallthru
      _
    // Predicated region
    $region10: #{discriminator_forward.1} parent=1 // pred_check
      _
    $region11: #{discriminator_forward.1} parent=1 // pred_check_branch
      %26 = sbr.rel (0) target = $region13
    $region12: #{discriminator_forward.1} parent=1 // pred_region
      _
    $region13: #{discriminator_forward.1} parent=1 // pred_fallthru
      _
    // Predicated region
    $region14: #{discriminator_forward.1} parent=1 // pred_check
      _
    $region15: #{discriminator_forward.1} parent=1 // pred_check_branch
      %28 = sbr.rel (0) target = $region17
    $region16: #{discriminator_forward.1} parent=1 // pred_region
      _
    $region17: #{discriminator_forward.1} parent=1 // pred_fallthru
      _
    // Predicated region
    $region18: #{discriminator_forward.1} parent=1 // pred_check
      _
    $region19: #{discriminator_forward.1} parent=1 // pred_check_branch
      %30 = sbr.rel (0) target = $region21
    $region20: #{discriminator_forward.1} parent=1 // pred_region
      %32 = vsyncadd [#allocation3], 0
      %s33 = sshll.u32 %s4, 4
      %s34 = int_to_ptr.hbm [resolvable:$true] %s33
      %s35 = sshll.u32 [#allocation2], 4
      %s36 = int_to_ptr.vmem [resolvable:$true] %s35
      %41 = dma.hbm_to_vmem [thread:$0]  %s34, 512, %s36, [#allocation3], 128, 128, 8
    $region21: #{discriminator_forward.1} parent=1 // pred_fallthru
      _
    // Predicated region
    $region22: #{discriminator_forward.1} parent=1 // pred_check
      _
    $region23: #{discriminator_forward.1} parent=1 // pred_check_branch
      %43 = sbr.rel (0) target = $region25
    $region24: #{discriminator_forward.1} parent=1 // pred_region
      %45 = vsyncadd [#allocation6], 0
      %s46 = sshll.u32 %s5, 4
      %s47 = int_to_ptr.hbm [resolvable:$true] %s46
      %s48 = sshll.u32 [#allocation5], 4
      %s49 = int_to_ptr.vmem [resolvable:$true] %s48
      %54 = dma.hbm_to_vmem [thread:$0]  %s47, 512, %s49, [#allocation6], 128, 128, 8
    $region25: #{discriminator_forward.1} parent=1 // pred_fallthru
      _
    // Predicated region
    $region26: #{discriminator_forward.1} parent=1 // pred_check
      _
    $region27: #{discriminator_forward.1} parent=1 // pred_check_branch
      %56 = sbr.rel (0) target = $region29
    $region28: #{discriminator_forward.1} parent=1 // pred_region
      _
    $region29: #{discriminator_forward.1} parent=1 // pred_fallthru
      _
    // Predicated region
    $region30: #{discriminator_forward.1} parent=1 // pred_check
      _
    $region31: #{discriminator_forward.1} parent=1 // pred_check_branch
      %58 = sbr.rel (0) target = $region33
    $region32: #{discriminator_forward.1} parent=1 // pred_region
      _
    $region33: #{discriminator_forward.1} parent=1 // pred_fallthru
      _
    // Predicated region
    $region34: #{discriminator_forward.1} parent=1 // pred_check
      _
    $region35: #{discriminator_forward.1} parent=1 // pred_check_branch
      %60 = sbr.rel (0) target = $region37
    $region36: #{discriminator_forward.1} parent=1 // pred_region
      _
    $region37: #{discriminator_forward.1} parent=1 // pred_fallthru
      _
    // Predicated region
    $region38: #{discriminator_forward.1} parent=1 // pred_check
      _
    $region39: #{discriminator_forward.1} parent=1 // pred_check_branch
      %62 = sbr.rel (0) target = $region41
    $region40: #{discriminator_forward.1} parent=1 // pred_region
      %64 = dma.done [#allocation3], 512
    $region41: #{discriminator_forward.1} parent=1 // pred_fallthru
      _
    // Predicated region
    $region42: #{discriminator_forward.1} parent=1 // pred_check
      _
    $region43: #{discriminator_forward.1} parent=1 // pred_check_branch
      %66 = sbr.rel (0) target = $region45
    $region44: #{discriminator_forward.1} parent=1 // pred_region
      %68 = dma.done [#allocation6], 512
    $region45: #{discriminator_forward.1} parent=1 // pred_fallthru
      _
    %v69 = vld [vmem:[%s2] sm:$0xff]
    %v70 = vld [vmem:[%s2 + $0x8] sm:$0xff]
    %v71 = vld [vmem:[%s2 + $0x10] sm:$0xff]
    %v72 = vld [vmem:[%s2 + $0x18] sm:$0xff]
    %v73 = vld [vmem:[#allocation5] sm:$0xff]
    %v74 = vld [vmem:[#allocation5 + $0x8] sm:$0xff]
    %v75 = vld [vmem:[#allocation5 + $0x10] sm:$0xff]
    %v76 = vld [vmem:[#allocation5 + $0x18] sm:$0xff]
    %v77 = vld [vmem:[%s0] sm:$0xff]
    %v78 = vld [vmem:[%s0 + $0x8] sm:$0xff]
    %v79 = vld [vmem:[%s1] sm:$0xf]
    %v80 = vld [vmem:[%s3] sm:$0x1]
    %v82 = vperm.slane %v80, 0
    %vm84 = vcmask 31744
    %v86 = vsel %vm84, %v77, 0
    %v89 = vsel %vm84, %v78, 0
    %vm91 = vcmask 1043456
    %v93 = vsel %vm91, %v79, 0
    %95 = vmatpush.msra.mxu0 0.0
    %96 = vmatpush.msra.mxu0 0.0
    %97 = vmatpush.msra.mxu0 0.0
    %98 = vmatpush.msra.mxu0 0.0
    %99 = vmatpush.msra.mxu0 0.0
    %100 = vmatpush.msra.mxu0 0.0
    %101 = vmatpush.msra.mxu0 0.0
    %102 = vmatpush.msra.mxu0 0.0
    %103 = vmatpush.msra.mxu0 0.0
    %104 = vmatpush.msra.mxu0 0.0
    %105 = vmatpush.msra.mxu0 0.0
    %106 = vmatpush.msra.mxu0 0.0
    %107 = vmatpush.msra.mxu0 0.0
    %108 = vmatpush.msra.mxu0 0.0
    %109 = vmatpush.msra.mxu0 0.0
    %110 = vmatpush.msra.mxu0 %v93
    %111 = vmatmul.f32.gmra.mxu0 %v86
    %v112 = vpop.f32.mrf.mxu0
    %v113 = vadd.f32 %v82, %v112
    %114 = vmatmul.f32.gmra.mxu0 %v89
    %v115 = vpop.f32.mrf.mxu0
    %v116 = vadd.f32 %v82, %v115
    %117 = vdwg.mxu0
    %vm118 = vcmask 261120
    %v120 = vsel %vm118, 0.0, 0
    %122 = vmatpush.msra.mxu0 0.0
    %123 = vmatpush.msra.mxu0 0.0
    %124 = vmatpush.msra.mxu0 0.0
    %125 = vmatpush.msra.mxu0 0.0
    %126 = vmatpush.msra.mxu0 0.0
    %127 = vmatpush.msra.mxu0 0.0
    %128 = vmatpush.msra.mxu0 0.0
    %129 = vmatpush.msra.mxu0 0.0
    %130 = vmatpush.msra.mxu0 0.0
    %131 = vmatpush.msra.mxu0 0.0
    %132 = vmatpush.msra.mxu0 0.0
    %133 = vmatpush.msra.mxu0 0.0
    %134 = vmatpush.msra.mxu0 %v72
    %135 = vmatpush.msra.mxu0 %v71
    %136 = vmatpush.msra.mxu0 %v70
    %137 = vmatpush.msra.mxu0 %v69
    %138 = vmatmul.f32.gmra.mxu0 %v120
    %v139 = vpop.f32.mrf.mxu0
    %v140 = vadd.f32 0.0, %v139
    %141 = vdwg.mxu0
    %v142 = vadd.f32 %v113, %v140
    %v143 = vxor.u32 %v142, 2147483648
    %v144 = vmul.f32 %v143, 1.442695
    %v145 = vpow.pop %v144
    %v146 = vadd.f32 %v145, 1.0
    %v147 = vrcp.pop %v146
    %v148 = vmul.f32 %v146, %v147
    %v149 = vsub.f32 1.0, %v148
    %v150 = vmul.f32 %v147, %v149
    %v151 = vadd.f32 %v147, %v150
    %vm152 = vweird.f32 %v146
    %vm153 = vweird.f32 %v147
    %vm154 = vmor %vm152, %vm153
    %v155 = vsel %vm154, %v147, %v151
    %v156 = vand.u32 2147483647, %v146
    %vm157 = vcmp.eq.f32.partialorder %v156, 8.507059e+37
    %v158 = vand.u32 %v146, 2147483648
    %v159 = vor.u32 1.1754944e-38, %v158
    %v160 = vsel %vm157, %v159, %v155
    %v161 = vmul.f32 1.0, %v160
    %v162 = vtanh.pop %v142
    %v163 = vmul.f32 %v161, 0.0
    %165 = vrot.lane.b32.xlu0 %v162, 64
    %v166 = vpop.permute.xlu0 %165
    %v168 = vmul.f32 %v161, %v166
    %170 = vrot.lane.b32.xlu0 %v168, 32
    %v171 = vpop.permute.xlu0 %170
    %v173 = vadd.f32 %v163, %v171
    %v174 = vtanh.pop %v173
    %176 = vrot.lane.b32.xlu0 %v174, 64
    %v177 = vpop.permute.xlu0 %176
    %v179 = vmul.f32 %v161, %v177
    %181 = vrot.lane.b32.xlu0 %v179, 32
    %v182 = vpop.permute.xlu0 %181
    %v183 = vsel %vm118, %v182, 0
    %185 = vmatpush.msra.mxu0 0.0
    %186 = vmatpush.msra.mxu0 0.0
    %187 = vmatpush.msra.mxu0 0.0
    %188 = vmatpush.msra.mxu0 0.0
    %189 = vmatpush.msra.mxu0 0.0
    %190 = vmatpush.msra.mxu0 0.0
    %191 = vmatpush.msra.mxu0 0.0
    %192 = vmatpush.msra.mxu0 0.0
    %193 = vmatpush.msra.mxu0 0.0
    %194 = vmatpush.msra.mxu0 0.0
    %195 = vmatpush.msra.mxu0 0.0
    %196 = vmatpush.msra.mxu0 0.0
    %197 = vmatpush.msra.mxu0 %v72
    %198 = vmatpush.msra.mxu0 %v71
    %199 = vmatpush.msra.mxu0 %v70
    %200 = vmatpush.msra.mxu0 %v69
    %201 = vmatmul.f32.gmra.mxu0 %v183
    %v202 = vpop.f32.mrf.mxu0
    %v203 = vadd.f32 0.0, %v202
    %204 = vdwg.mxu0
    %v206 = vrot.slane %v203, 6
    %v208 = vadd.f32 %v113, %v206
    %v209 = vxor.u32 %v208, 2147483648
    %v210 = vmul.f32 %v209, 1.442695
    %v211 = vpow.pop %v210
    %v212 = vadd.f32 %v211, 1.0
    %v213 = vrcp.pop %v212
    %v214 = vmul.f32 %v212, %v213
    %v215 = vsub.f32 1.0, %v214
    %v216 = vmul.f32 %v213, %v215
    %v217 = vadd.f32 %v213, %v216
    %vm218 = vweird.f32 %v212
    %vm219 = vweird.f32 %v213
    %vm220 = vmor %vm218, %vm219
    %v221 = vsel %vm220, %v213, %v217
    %v222 = vand.u32 2147483647, %v212
    %vm223 = vcmp.eq.f32.partialorder %v222, 8.507059e+37
    %v224 = vand.u32 %v212, 2147483648
    %v225 = vor.u32 1.1754944e-38, %v224
    %v226 = vsel %vm223, %v225, %v221
    %v227 = vmul.f32 1.0, %v226
    %v228 = vtanh.pop %v208
    %v230 = vrot.slane %v173, 6
    %v232 = vmul.f32 %v227, %v230
    %234 = vrot.lane.b32.xlu0 %v228, 64
    %v235 = vpop.permute.xlu0 %234
    %v237 = vmul.f32 %v227, %v235
    %239 = vrot.lane.b32.xlu0 %v237, 32
    %v240 = vpop.permute.xlu0 %239
    %v242 = vadd.f32 %v232, %v240
    %v243 = vtanh.pop %v242
    %245 = vrot.lane.b32.xlu0 %v243, 64
    %v246 = vpop.permute.xlu0 %245
    %v248 = vmul.f32 %v227, %v246
    %v250 = vrot.slane %v248, 2
    %251 = vrot.lane.b32.xlu0 %v250, 32
    %v252 = vpop.permute.xlu0 %251
    %v253 = vsel %vm118, %v252, 0
    %255 = vmatpush.msra.mxu0 0.0
    %256 = vmatpush.msra.mxu0 0.0
    %257 = vmatpush.msra.mxu0 0.0
    %258 = vmatpush.msra.mxu0 0.0
    %259 = vmatpush.msra.mxu0 0.0
    %260 = vmatpush.msra.mxu0 0.0
    %261 = vmatpush.msra.mxu0 0.0
    %262 = vmatpush.msra.mxu0 0.0
    %263 = vmatpush.msra.mxu0 0.0
    %264 = vmatpush.msra.mxu0 0.0
    %265 = vmatpush.msra.mxu0 0.0
    %266 = vmatpush.msra.mxu0 0.0
    %267 = vmatpush.msra.mxu0 %v72
    %268 = vmatpush.msra.mxu0 %v71
    %269 = vmatpush.msra.mxu0 %v70
    %270 = vmatpush.msra.mxu0 %v69
    %271 = vmatmul.f32.gmra.mxu0 %v253
    %v272 = vpop.f32.mrf.mxu0
    %v273 = vadd.f32 0.0, %v272
    %274 = vdwg.mxu0
    %v276 = vrot.slane %v273, 4
    %v278 = vadd.f32 %v113, %v276
    %v279 = vxor.u32 %v278, 2147483648
    %v280 = vmul.f32 %v279, 1.442695
    %v281 = vpow.pop %v280
    %v282 = vadd.f32 %v281, 1.0
    %v283 = vrcp.pop %v282
    %v284 = vmul.f32 %v282, %v283
    %v285 = vsub.f32 1.0, %v284
    %v286 = vmul.f32 %v283, %v285
    %v287 = vadd.f32 %v283, %v286
    %vm288 = vweird.f32 %v282
    %vm289 = vweird.f32 %v283
    %vm290 = vmor %vm288, %vm289
    %v291 = vsel %vm290, %v283, %v287
    %v292 = vand.u32 2147483647, %v282
    %vm293 = vcmp.eq.f32.partialorder %v292, 8.507059e+37
    %v294 = vand.u32 %v282, 2147483648
    %v295 = vor.u32 1.1754944e-38, %v294
    %v296 = vsel %vm293, %v295, %v291
    %v297 = vmul.f32 1.0, %v296
    %v298 = vtanh.pop %v278
    %v300 = vrot.slane %v242, 6
    %v302 = vmul.f32 %v297, %v300
    %304 = vrot.lane.b32.xlu0 %v298, 64
    %v305 = vpop.permute.xlu0 %304
    %v307 = vmul.f32 %v297, %v305
    %309 = vrot.lane.b32.xlu0 %v307, 32
    %v310 = vpop.permute.xlu0 %309
    %v312 = vadd.f32 %v302, %v310
    %v313 = vtanh.pop %v312
    %315 = vrot.lane.b32.xlu0 %v313, 64
    %v316 = vpop.permute.xlu0 %315
    %v318 = vmul.f32 %v297, %v316
    %v320 = vrot.slane %v318, 4
    %321 = vrot.lane.b32.xlu0 %v320, 32
    %v322 = vpop.permute.xlu0 %321
    %v323 = vsel %vm118, %v322, 0
    %325 = vmatpush.msra.mxu0 0.0
    %326 = vmatpush.msra.mxu0 0.0
    %327 = vmatpush.msra.mxu0 0.0
    %328 = vmatpush.msra.mxu0 0.0
    %329 = vmatpush.msra.mxu0 0.0
    %330 = vmatpush.msra.mxu0 0.0
    %331 = vmatpush.msra.mxu0 0.0
    %332 = vmatpush.msra.mxu0 0.0
    %333 = vmatpush.msra.mxu0 0.0
    %334 = vmatpush.msra.mxu0 0.0
    %335 = vmatpush.msra.mxu0 0.0
    %336 = vmatpush.msra.mxu0 0.0
    %337 = vmatpush.msra.mxu0 %v72
    %338 = vmatpush.msra.mxu0 %v71
    %339 = vmatpush.msra.mxu0 %v70
    %340 = vmatpush.msra.mxu0 %v69
    %341 = vmatmul.f32.gmra.mxu0 %v323
    %v342 = vpop.f32.mrf.mxu0
    %v343 = vadd.f32 0.0, %v342
    %344 = vdwg.mxu0
    %v346 = vrot.slane %v343, 2
    %v348 = vadd.f32 %v113, %v346
    %v349 = vxor.u32 %v348, 2147483648
    %v350 = vmul.f32 %v349, 1.442695
    %v351 = vpow.pop %v350
    %v352 = vadd.f32 %v351, 1.0
    %v353 = vrcp.pop %v352
    %v354 = vmul.f32 %v352, %v353
    %v355 = vsub.f32 1.0, %v354
    %v356 = vmul.f32 %v353, %v355
    %v357 = vadd.f32 %v353, %v356
    %vm358 = vweird.f32 %v352
    %vm359 = vweird.f32 %v353
    %vm360 = vmor %vm358, %vm359
    %v361 = vsel %vm360, %v353, %v357
    %v362 = vand.u32 2147483647, %v352
    %vm363 = vcmp.eq.f32.partialorder %v362, 8.507059e+37
    %v364 = vand.u32 %v352, 2147483648
    %v365 = vor.u32 1.1754944e-38, %v364
    %v366 = vsel %vm363, %v365, %v361
    %v367 = vmul.f32 1.0, %v366
    %v368 = vtanh.pop %v348
    %v370 = vrot.slane %v312, 6
    %v372 = vmul.f32 %v367, %v370
    %374 = vrot.lane.b32.xlu0 %v368, 64
    %v375 = vpop.permute.xlu0 %374
    %v377 = vmul.f32 %v367, %v375
    %379 = vrot.lane.b32.xlu0 %v377, 32
    %v380 = vpop.permute.xlu0 %379
    %v382 = vadd.f32 %v372, %v380
    %v383 = vtanh.pop %v382
    %385 = vrot.lane.b32.xlu0 %v383, 64
    %v386 = vpop.permute.xlu0 %385
    %v388 = vmul.f32 %v367, %v386
    %v390 = vrot.slane %v388, 6
    %391 = vrot.lane.b32.xlu0 %v390, 32
    %v392 = vpop.permute.xlu0 %391
    %v393 = vsel %vm118, %v392, 0
    %395 = vmatpush.msra.mxu0 0.0
    %396 = vmatpush.msra.mxu0 0.0
    %397 = vmatpush.msra.mxu0 0.0
    %398 = vmatpush.msra.mxu0 0.0
    %399 = vmatpush.msra.mxu0 0.0
    %400 = vmatpush.msra.mxu0 0.0
    %401 = vmatpush.msra.mxu0 0.0
    %402 = vmatpush.msra.mxu0 0.0
    %403 = vmatpush.msra.mxu0 0.0
    %404 = vmatpush.msra.mxu0 0.0
    %405 = vmatpush.msra.mxu0 0.0
    %406 = vmatpush.msra.mxu0 0.0
    %407 = vmatpush.msra.mxu0 %v72
    %408 = vmatpush.msra.mxu0 %v71
    %409 = vmatpush.msra.mxu0 %v70
    %410 = vmatpush.msra.mxu0 %v69
    %411 = vmatmul.f32.gmra.mxu0 %v393
    %v412 = vpop.f32.mrf.mxu0
    %v413 = vadd.f32 0.0, %v412
    %414 = vdwg.mxu0
    %v415 = vadd.f32 %v116, %v413
    %v416 = vxor.u32 %v415, 2147483648
    %v417 = vmul.f32 %v416, 1.442695
    %v418 = vpow.pop %v417
    %v419 = vadd.f32 %v418, 1.0
    %v420 = vrcp.pop %v419
    %v421 = vmul.f32 %v419, %v420
    %v422 = vsub.f32 1.0, %v421
    %v423 = vmul.f32 %v420, %v422
    %v424 = vadd.f32 %v420, %v423
    %vm425 = vweird.f32 %v419
    %vm426 = vweird.f32 %v420
    %vm427 = vmor %vm425, %vm426
    %v428 = vsel %vm427, %v420, %v424
    %v429 = vand.u32 2147483647, %v419
    %vm430 = vcmp.eq.f32.partialorder %v429, 8.507059e+37
    %v431 = vand.u32 %v419, 2147483648
    %v432 = vor.u32 1.1754944e-38, %v431
    %v433 = vsel %vm430, %v432, %v428
    %v434 = vmul.f32 1.0, %v433
    %v435 = vtanh.pop %v415
    %v437 = vrot.slane %v382, 6
    %v439 = vmul.f32 %v434, %v437
    %441 = vrot.lane.b32.xlu0 %v435, 64
    %v442 = vpop.permute.xlu0 %441
    %v444 = vmul.f32 %v434, %v442
    %446 = vrot.lane.b32.xlu0 %v444, 32
    %v447 = vpop.permute.xlu0 %446
    %v449 = vadd.f32 %v439, %v447
    %v450 = vtanh.pop %v449
    %452 = vrot.lane.b32.xlu0 %v450, 64
    %v453 = vpop.permute.xlu0 %452
    %v455 = vmul.f32 %v434, %v453
    %457 = vrot.lane.b32.xlu0 %v455, 32
    %v458 = vpop.permute.xlu0 %457
    %v459 = vsel %vm118, %v458, 0
    %461 = vmatpush.msra.mxu0 0.0
    %462 = vmatpush.msra.mxu0 0.0
    %463 = vmatpush.msra.mxu0 0.0
    %464 = vmatpush.msra.mxu0 0.0
    %465 = vmatpush.msra.mxu0 0.0
    %466 = vmatpush.msra.mxu0 0.0
    %467 = vmatpush.msra.mxu0 0.0
    %468 = vmatpush.msra.mxu0 0.0
    %469 = vmatpush.msra.mxu0 0.0
    %470 = vmatpush.msra.mxu0 0.0
    %471 = vmatpush.msra.mxu0 0.0
    %472 = vmatpush.msra.mxu0 0.0
    %473 = vmatpush.msra.mxu0 %v72
    %474 = vmatpush.msra.mxu0 %v71
    %475 = vmatpush.msra.mxu0 %v70
    %476 = vmatpush.msra.mxu0 %v69
    %477 = vmatmul.f32.gmra.mxu0 %v459
    %v478 = vpop.f32.mrf.mxu0
    %v479 = vadd.f32 0.0, %v478
    %480 = vdwg.mxu0
    %v482 = vrot.slane %v479, 6
    %v484 = vadd.f32 %v116, %v482
    %v485 = vxor.u32 %v484, 2147483648
    %v486 = vmul.f32 %v485, 1.442695
    %v487 = vpow.pop %v486
    %v488 = vadd.f32 %v487, 1.0
    %v489 = vrcp.pop %v488
    %v490 = vmul.f32 %v488, %v489
    %v491 = vsub.f32 1.0, %v490
    %v492 = vmul.f32 %v489, %v491
    %v493 = vadd.f32 %v489, %v492
    %vm494 = vweird.f32 %v488
    %vm495 = vweird.f32 %v489
    %vm496 = vmor %vm494, %vm495
    %v497 = vsel %vm496, %v489, %v493
    %v498 = vand.u32 2147483647, %v488
    %vm499 = vcmp.eq.f32.partialorder %v498, 8.507059e+37
    %v500 = vand.u32 %v488, 2147483648
    %v501 = vor.u32 1.1754944e-38, %v500
    %v502 = vsel %vm499, %v501, %v497
    %v503 = vmul.f32 1.0, %v502
    %v504 = vtanh.pop %v484
    %v506 = vrot.slane %v449, 6
    %v508 = vmul.f32 %v503, %v506
    %510 = vrot.lane.b32.xlu0 %v504, 64
    %v511 = vpop.permute.xlu0 %510
    %v513 = vmul.f32 %v503, %v511
    %515 = vrot.lane.b32.xlu0 %v513, 32
    %v516 = vpop.permute.xlu0 %515
    %v518 = vadd.f32 %v508, %v516
    %v519 = vtanh.pop %v518
    %521 = vrot.lane.b32.xlu0 %v519, 64
    %v522 = vpop.permute.xlu0 %521
    %v524 = vmul.f32 %v503, %v522
    %v526 = vrot.slane %v524, 2
    %527 = vrot.lane.b32.xlu0 %v526, 32
    %v528 = vpop.permute.xlu0 %527
    %v529 = vsel %vm118, %v528, 0
    %531 = vmatpush.msra.mxu0 0.0
    %532 = vmatpush.msra.mxu0 0.0
    %533 = vmatpush.msra.mxu0 0.0
    %534 = vmatpush.msra.mxu0 0.0
    %535 = vmatpush.msra.mxu0 0.0
    %536 = vmatpush.msra.mxu0 0.0
    %537 = vmatpush.msra.mxu0 0.0
    %538 = vmatpush.msra.mxu0 0.0
    %539 = vmatpush.msra.mxu0 0.0
    %540 = vmatpush.msra.mxu0 0.0
    %541 = vmatpush.msra.mxu0 0.0
    %542 = vmatpush.msra.mxu0 0.0
    %543 = vmatpush.msra.mxu0 %v72
    %544 = vmatpush.msra.mxu0 %v71
    %545 = vmatpush.msra.mxu0 %v70
    %546 = vmatpush.msra.mxu0 %v69
    %547 = vmatmul.f32.gmra.mxu0 %v529
    %v548 = vpop.f32.mrf.mxu0
    %v549 = vadd.f32 0.0, %v548
    %550 = vdwg.mxu0
    %v552 = vrot.slane %v549, 4
    %v554 = vadd.f32 %v116, %v552
    %v555 = vxor.u32 %v554, 2147483648
    %v556 = vmul.f32 %v555, 1.442695
    %v557 = vpow.pop %v556
    %v558 = vadd.f32 %v557, 1.0
    %v559 = vrcp.pop %v558
    %v560 = vmul.f32 %v558, %v559
    %v561 = vsub.f32 1.0, %v560
    %v562 = vmul.f32 %v559, %v561
    %v563 = vadd.f32 %v559, %v562
    %vm564 = vweird.f32 %v558
    %vm565 = vweird.f32 %v559
    %vm566 = vmor %vm564, %vm565
    %v567 = vsel %vm566, %v559, %v563
    %v568 = vand.u32 2147483647, %v558
    %vm569 = vcmp.eq.f32.partialorder %v568, 8.507059e+37
    %v570 = vand.u32 %v558, 2147483648
    %v571 = vor.u32 1.1754944e-38, %v570
    %v572 = vsel %vm569, %v571, %v567
    %v573 = vmul.f32 1.0, %v572
    %v574 = vtanh.pop %v554
    %v576 = vrot.slane %v518, 6
    %v578 = vmul.f32 %v573, %v576
    %580 = vrot.lane.b32.xlu0 %v574, 64
    %v581 = vpop.permute.xlu0 %580
    %v583 = vmul.f32 %v573, %v581
    %585 = vrot.lane.b32.xlu0 %v583, 32
    %v586 = vpop.permute.xlu0 %585
    %v588 = vadd.f32 %v578, %v586
    %v589 = vtanh.pop %v588
    %591 = vrot.lane.b32.xlu0 %v589, 64
    %v592 = vpop.permute.xlu0 %591
    %v594 = vmul.f32 %v573, %v592
    %v596 = vrot.slane %v594, 4
    %597 = vrot.lane.b32.xlu0 %v596, 32
    %v598 = vpop.permute.xlu0 %597
    %v599 = vsel %vm118, %v598, 0
    %601 = vmatpush.msra.mxu0 0.0
    %602 = vmatpush.msra.mxu0 0.0
    %603 = vmatpush.msra.mxu0 0.0
    %604 = vmatpush.msra.mxu0 0.0
    %605 = vmatpush.msra.mxu0 0.0
    %606 = vmatpush.msra.mxu0 0.0
    %607 = vmatpush.msra.mxu0 0.0
    %608 = vmatpush.msra.mxu0 0.0
    %609 = vmatpush.msra.mxu0 0.0
    %610 = vmatpush.msra.mxu0 0.0
    %611 = vmatpush.msra.mxu0 0.0
    %612 = vmatpush.msra.mxu0 0.0
    %613 = vmatpush.msra.mxu0 %v72
    %614 = vmatpush.msra.mxu0 %v71
    %615 = vmatpush.msra.mxu0 %v70
    %616 = vmatpush.msra.mxu0 %v69
    %617 = vmatmul.f32.gmra.mxu0 %v599
    %v618 = vpop.f32.mrf.mxu0
    %v619 = vadd.f32 0.0, %v618
    %620 = vdwg.mxu0
    %v622 = vrot.slane %v619, 2
    %v624 = vadd.f32 %v116, %v622
    %v625 = vxor.u32 %v624, 2147483648
    %v626 = vmul.f32 %v625, 1.442695
    %v627 = vpow.pop %v626
    %v628 = vadd.f32 %v627, 1.0
    %v629 = vrcp.pop %v628
    %v630 = vmul.f32 %v628, %v629
    %v631 = vsub.f32 1.0, %v630
    %v632 = vmul.f32 %v629, %v631
    %v633 = vadd.f32 %v629, %v632
    %vm634 = vweird.f32 %v628
    %vm635 = vweird.f32 %v629
    %vm636 = vmor %vm634, %vm635
    %v637 = vsel %vm636, %v629, %v633
    %v638 = vand.u32 2147483647, %v628
    %vm639 = vcmp.eq.f32.partialorder %v638, 8.507059e+37
    %v640 = vand.u32 %v628, 2147483648
    %v641 = vor.u32 1.1754944e-38, %v640
    %v642 = vsel %vm639, %v641, %v637
    %v643 = vmul.f32 1.0, %v642
    %v644 = vtanh.pop %v624
    %v646 = vrot.slane %v588, 6
    %v648 = vmul.f32 %v643, %v646
    %650 = vrot.lane.b32.xlu0 %v644, 64
    %v651 = vpop.permute.xlu0 %650
    %v653 = vmul.f32 %v643, %v651
    %655 = vrot.lane.b32.xlu0 %v653, 32
    %v656 = vpop.permute.xlu0 %655
    %v658 = vadd.f32 %v648, %v656
    %v659 = vtanh.pop %v658
    %661 = vrot.lane.b32.xlu0 %v659, 64
    %v662 = vpop.permute.xlu0 %661
    %v664 = vmul.f32 %v643, %v662
    %vm665 = vcmask 1041408
    %v666 = vsel %vm665, %v179, %v248
    %v667 = vsel %vm91, %v666, %v318
    %vm668 = vcmask 1045504
    %v669 = vsel %vm668, %v667, %v388
    %v670 = vsel %vm665, %v455, %v524
    %v671 = vsel %vm91, %v670, %v594
    %v672 = vsel %vm668, %v671, %v664
    %v673 = vld [vmem:[#allocation2] sm:$0xff]
    %v674 = vld [vmem:[#allocation2 + $0x8] sm:$0xff]
    %v675 = vld [vmem:[#allocation2 + $0x10] sm:$0xff]
    %v676 = vld [vmem:[#allocation2 + $0x18] sm:$0xff]
    %v677 = vld [vmem:[%s6] sm:$0x1]
    %v679 = vperm.slane %v677, 0
    %683 = vrot.lane.b32.xlu0 %v669, 32
    %v684 = vpop.permute.xlu0 %683
    %685 = vrot.lane.b32.xlu0 %v672, 32
    %v686 = vpop.permute.xlu0 %685
    %v687 = vsel %vm118, %v684, 0
    %v689 = vsel %vm118, %v686, 0
    %691 = vmatpush.msra.mxu0 0.0
    %692 = vmatpush.msra.mxu0 0.0
    %693 = vmatpush.msra.mxu0 0.0
    %694 = vmatpush.msra.mxu0 0.0
    %695 = vmatpush.msra.mxu0 0.0
    %696 = vmatpush.msra.mxu0 0.0
    %697 = vmatpush.msra.mxu0 0.0
    %698 = vmatpush.msra.mxu0 0.0
    %699 = vmatpush.msra.mxu0 0.0
    %700 = vmatpush.msra.mxu0 0.0
    %701 = vmatpush.msra.mxu0 0.0
    %702 = vmatpush.msra.mxu0 0.0
    %703 = vmatpush.msra.mxu0 %v676
    %704 = vmatpush.msra.mxu0 %v675
    %705 = vmatpush.msra.mxu0 %v674
    %706 = vmatpush.msra.mxu0 %v673
    %707 = vmatmul.f32.gmra.mxu0 %v687
    %v708 = vpop.f32.mrf.mxu0
    %v709 = vadd.f32 %v679, %v708
    %710 = vmatmul.f32.gmra.mxu0 %v689
    %v711 = vpop.f32.mrf.mxu0
    %v712 = vadd.f32 %v679, %v711
    %713 = vdwg.mxu0
    %714 = vmatpush.msra.mxu0 0.0
    %715 = vmatpush.msra.mxu0 0.0
    %716 = vmatpush.msra.mxu0 0.0
    %717 = vmatpush.msra.mxu0 0.0
    %718 = vmatpush.msra.mxu0 0.0
    %719 = vmatpush.msra.mxu0 0.0
    %720 = vmatpush.msra.mxu0 0.0
    %721 = vmatpush.msra.mxu0 0.0
    %722 = vmatpush.msra.mxu0 0.0
    %723 = vmatpush.msra.mxu0 0.0
    %724 = vmatpush.msra.mxu0 0.0
    %725 = vmatpush.msra.mxu0 0.0
    %726 = vmatpush.msra.mxu0 %v76
    %727 = vmatpush.msra.mxu0 %v75
    %728 = vmatpush.msra.mxu0 %v74
    %729 = vmatpush.msra.mxu0 %v73
    %730 = vmatmul.f32.gmra.mxu0 %v120
    %v731 = vpop.f32.mrf.mxu0
    %v732 = vadd.f32 0.0, %v731
    %733 = vdwg.mxu0
    %v734 = vadd.f32 %v709, %v732
    %v735 = vxor.u32 %v734, 2147483648
    %v736 = vmul.f32 %v735, 1.442695
    %v737 = vpow.pop %v736
    %v738 = vadd.f32 %v737, 1.0
    %v739 = vrcp.pop %v738
    %v740 = vmul.f32 %v738, %v739
    %v741 = vsub.f32 1.0, %v740
    %v742 = vmul.f32 %v739, %v741
    %v743 = vadd.f32 %v739, %v742
    %vm744 = vweird.f32 %v738
    %vm745 = vweird.f32 %v739
    %vm746 = vmor %vm744, %vm745
    %v747 = vsel %vm746, %v739, %v743
    %v748 = vand.u32 2147483647, %v738
    %vm749 = vcmp.eq.f32.partialorder %v748, 8.507059e+37
    %v750 = vand.u32 %v738, 2147483648
    %v751 = vor.u32 1.1754944e-38, %v750
    %v752 = vsel %vm749, %v751, %v747
    %v753 = vmul.f32 1.0, %v752
    %v754 = vtanh.pop %v734
    %v755 = vmul.f32 %v753, 0.0
    %757 = vrot.lane.b32.xlu0 %v754, 64
    %v758 = vpop.permute.xlu0 %757
    %v760 = vmul.f32 %v753, %v758
    %762 = vrot.lane.b32.xlu0 %v760, 32
    %v763 = vpop.permute.xlu0 %762
    %v765 = vadd.f32 %v755, %v763
    %v766 = vtanh.pop %v765
    %768 = vrot.lane.b32.xlu0 %v766, 64
    %v769 = vpop.permute.xlu0 %768
    %v771 = vmul.f32 %v753, %v769
    %773 = vrot.lane.b32.xlu0 %v771, 32
    %v774 = vpop.permute.xlu0 %773
    %v775 = vsel %vm118, %v774, 0
    %777 = vmatpush.msra.mxu0 0.0
    %778 = vmatpush.msra.mxu0 0.0
    %779 = vmatpush.msra.mxu0 0.0
    %780 = vmatpush.msra.mxu0 0.0
    %781 = vmatpush.msra.mxu0 0.0
    %782 = vmatpush.msra.mxu0 0.0
    %783 = vmatpush.msra.mxu0 0.0
    %784 = vmatpush.msra.mxu0 0.0
    %785 = vmatpush.msra.mxu0 0.0
    %786 = vmatpush.msra.mxu0 0.0
    %787 = vmatpush.msra.mxu0 0.0
    %788 = vmatpush.msra.mxu0 0.0
    %789 = vmatpush.msra.mxu0 %v76
    %790 = vmatpush.msra.mxu0 %v75
    %791 = vmatpush.msra.mxu0 %v74
    %792 = vmatpush.msra.mxu0 %v73
    %793 = vmatmul.f32.gmra.mxu0 %v775
    %v794 = vpop.f32.mrf.mxu0
    %v795 = vadd.f32 0.0, %v794
    %796 = vdwg.mxu0
    %v798 = vrot.slane %v795, 6
    %v800 = vadd.f32 %v709, %v798
    %v801 = vxor.u32 %v800, 2147483648
    %v802 = vmul.f32 %v801, 1.442695
    %v803 = vpow.pop %v802
    %v804 = vadd.f32 %v803, 1.0
    %v805 = vrcp.pop %v804
    %v806 = vmul.f32 %v804, %v805
    %v807 = vsub.f32 1.0, %v806
    %v808 = vmul.f32 %v805, %v807
    %v809 = vadd.f32 %v805, %v808
    %vm810 = vweird.f32 %v804
    %vm811 = vweird.f32 %v805
    %vm812 = vmor %vm810, %vm811
    %v813 = vsel %vm812, %v805, %v809
    %v814 = vand.u32 2147483647, %v804
    %vm815 = vcmp.eq.f32.partialorder %v814, 8.507059e+37
    %v816 = vand.u32 %v804, 2147483648
    %v817 = vor.u32 1.1754944e-38, %v816
    %v818 = vsel %vm815, %v817, %v813
    %v819 = vmul.f32 1.0, %v818
    %v820 = vtanh.pop %v800
    %v822 = vrot.slane %v765, 6
    %v824 = vmul.f32 %v819, %v822
    %826 = vrot.lane.b32.xlu0 %v820, 64
    %v827 = vpop.permute.xlu0 %826
    %v829 = vmul.f32 %v819, %v827
    %831 = vrot.lane.b32.xlu0 %v829, 32
    %v832 = vpop.permute.xlu0 %831
    %v834 = vadd.f32 %v824, %v832
    %v835 = vtanh.pop %v834
    %837 = vrot.lane.b32.xlu0 %v835, 64
    %v838 = vpop.permute.xlu0 %837
    %v840 = vmul.f32 %v819, %v838
    %v842 = vrot.slane %v840, 2
    %843 = vrot.lane.b32.xlu0 %v842, 32
    %v844 = vpop.permute.xlu0 %843
    %v845 = vsel %vm118, %v844, 0
    %847 = vmatpush.msra.mxu0 0.0
    %848 = vmatpush.msra.mxu0 0.0
    %849 = vmatpush.msra.mxu0 0.0
    %850 = vmatpush.msra.mxu0 0.0
    %851 = vmatpush.msra.mxu0 0.0
    %852 = vmatpush.msra.mxu0 0.0
    %853 = vmatpush.msra.mxu0 0.0
    %854 = vmatpush.msra.mxu0 0.0
    %855 = vmatpush.msra.mxu0 0.0
    %856 = vmatpush.msra.mxu0 0.0
    %857 = vmatpush.msra.mxu0 0.0
    %858 = vmatpush.msra.mxu0 0.0
    %859 = vmatpush.msra.mxu0 %v76
    %860 = vmatpush.msra.mxu0 %v75
    %861 = vmatpush.msra.mxu0 %v74
    %862 = vmatpush.msra.mxu0 %v73
    %863 = vmatmul.f32.gmra.mxu0 %v845
    %v864 = vpop.f32.mrf.mxu0
    %v865 = vadd.f32 0.0, %v864
    %866 = vdwg.mxu0
    %v868 = vrot.slane %v865, 4
    %v870 = vadd.f32 %v709, %v868
    %v871 = vxor.u32 %v870, 2147483648
    %v872 = vmul.f32 %v871, 1.442695
    %v873 = vpow.pop %v872
    %v874 = vadd.f32 %v873, 1.0
    %v875 = vrcp.pop %v874
    %v876 = vmul.f32 %v874, %v875
    %v877 = vsub.f32 1.0, %v876
    %v878 = vmul.f32 %v875, %v877
    %v879 = vadd.f32 %v875, %v878
    %vm880 = vweird.f32 %v874
    %vm881 = vweird.f32 %v875
    %vm882 = vmor %vm880, %vm881
    %v883 = vsel %vm882, %v875, %v879
    %v884 = vand.u32 2147483647, %v874
    %vm885 = vcmp.eq.f32.partialorder %v884, 8.507059e+37
    %v886 = vand.u32 %v874, 2147483648
    %v887 = vor.u32 1.1754944e-38, %v886
    %v888 = vsel %vm885, %v887, %v883
    %v889 = vmul.f32 1.0, %v888
    %v890 = vtanh.pop %v870
    %v892 = vrot.slane %v834, 6
    %v894 = vmul.f32 %v889, %v892
    %896 = vrot.lane.b32.xlu0 %v890, 64
    %v897 = vpop.permute.xlu0 %896
    %v899 = vmul.f32 %v889, %v897
    %901 = vrot.lane.b32.xlu0 %v899, 32
    %v902 = vpop.permute.xlu0 %901
    %v904 = vadd.f32 %v894, %v902
    %v905 = vtanh.pop %v904
    %907 = vrot.lane.b32.xlu0 %v905, 64
    %v908 = vpop.permute.xlu0 %907
    %v910 = vmul.f32 %v889, %v908
    %v912 = vrot.slane %v910, 4
    %913 = vrot.lane.b32.xlu0 %v912, 32
    %v914 = vpop.permute.xlu0 %913
    %v915 = vsel %vm118, %v914, 0
    %917 = vmatpush.msra.mxu0 0.0
    %918 = vmatpush.msra.mxu0 0.0
    %919 = vmatpush.msra.mxu0 0.0
    %920 = vmatpush.msra.mxu0 0.0
    %921 = vmatpush.msra.mxu0 0.0
    %922 = vmatpush.msra.mxu0 0.0
    %923 = vmatpush.msra.mxu0 0.0
    %924 = vmatpush.msra.mxu0 0.0
    %925 = vmatpush.msra.mxu0 0.0
    %926 = vmatpush.msra.mxu0 0.0
    %927 = vmatpush.msra.mxu0 0.0
    %928 = vmatpush.msra.mxu0 0.0
    %929 = vmatpush.msra.mxu0 %v76
    %930 = vmatpush.msra.mxu0 %v75
    %931 = vmatpush.msra.mxu0 %v74
    %932 = vmatpush.msra.mxu0 %v73
    %933 = vmatmul.f32.gmra.mxu0 %v915
    %v934 = vpop.f32.mrf.mxu0
    %v935 = vadd.f32 0.0, %v934
    %936 = vdwg.mxu0
    %v938 = vrot.slane %v935, 2
    %v940 = vadd.f32 %v709, %v938
    %v941 = vxor.u32 %v940, 2147483648
    %v942 = vmul.f32 %v941, 1.442695
    %v943 = vpow.pop %v942
    %v944 = vadd.f32 %v943, 1.0
    %v945 = vrcp.pop %v944
    %v946 = vmul.f32 %v944, %v945
    %v947 = vsub.f32 1.0, %v946
    %v948 = vmul.f32 %v945, %v947
    %v949 = vadd.f32 %v945, %v948
    %vm950 = vweird.f32 %v944
    %vm951 = vweird.f32 %v945
    %vm952 = vmor %vm950, %vm951
    %v953 = vsel %vm952, %v945, %v949
    %v954 = vand.u32 2147483647, %v944
    %vm955 = vcmp.eq.f32.partialorder %v954, 8.507059e+37
    %v956 = vand.u32 %v944, 2147483648
    %v957 = vor.u32 1.1754944e-38, %v956
    %v958 = vsel %vm955, %v957, %v953
    %v959 = vmul.f32 1.0, %v958
    %v960 = vtanh.pop %v940
    %v962 = vrot.slane %v904, 6
    %v964 = vmul.f32 %v959, %v962
    %966 = vrot.lane.b32.xlu0 %v960, 64
    %v967 = vpop.permute.xlu0 %966
    %v969 = vmul.f32 %v959, %v967
    %971 = vrot.lane.b32.xlu0 %v969, 32
    %v972 = vpop.permute.xlu0 %971
    %v974 = vadd.f32 %v964, %v972
    %v975 = vtanh.pop %v974
    %977 = vrot.lane.b32.xlu0 %v975, 64
    %v978 = vpop.permute.xlu0 %977
    %v980 = vmul.f32 %v959, %v978
    %v982 = vrot.slane %v980, 6
    %983 = vrot.lane.b32.xlu0 %v982, 32
    %v984 = vpop.permute.xlu0 %983
    %v985 = vsel %vm118, %v984, 0
    %987 = vmatpush.msra.mxu0 0.0
    %988 = vmatpush.msra.mxu0 0.0
    %989 = vmatpush.msra.mxu0 0.0
    %990 = vmatpush.msra.mxu0 0.0
    %991 = vmatpush.msra.mxu0 0.0
    %992 = vmatpush.msra.mxu0 0.0
    %993 = vmatpush.msra.mxu0 0.0
    %994 = vmatpush.msra.mxu0 0.0
    %995 = vmatpush.msra.mxu0 0.0
    %996 = vmatpush.msra.mxu0 0.0
    %997 = vmatpush.msra.mxu0 0.0
    %998 = vmatpush.msra.mxu0 0.0
    %999 = vmatpush.msra.mxu0 %v76
    %1000 = vmatpush.msra.mxu0 %v75
    %1001 = vmatpush.msra.mxu0 %v74
    %1002 = vmatpush.msra.mxu0 %v73
    %1003 = vmatmul.f32.gmra.mxu0 %v985
    %v1004 = vpop.f32.mrf.mxu0
    %v1005 = vadd.f32 0.0, %v1004
    %1006 = vdwg.mxu0
    %v1007 = vadd.f32 %v712, %v1005
    %v1008 = vxor.u32 %v1007, 2147483648
    %v1009 = vmul.f32 %v1008, 1.442695
    %v1010 = vpow.pop %v1009
    %v1011 = vadd.f32 %v1010, 1.0
    %v1012 = vrcp.pop %v1011
    %v1013 = vmul.f32 %v1011, %v1012
    %v1014 = vsub.f32 1.0, %v1013
    %v1015 = vmul.f32 %v1012, %v1014
    %v1016 = vadd.f32 %v1012, %v1015
    %vm1017 = vweird.f32 %v1011
    %vm1018 = vweird.f32 %v1012
    %vm1019 = vmor %vm1017, %vm1018
    %v1020 = vsel %vm1019, %v1012, %v1016
    %v1021 = vand.u32 2147483647, %v1011
    %vm1022 = vcmp.eq.f32.partialorder %v1021, 8.507059e+37
    %v1023 = vand.u32 %v1011, 2147483648
    %v1024 = vor.u32 1.1754944e-38, %v1023
    %v1025 = vsel %vm1022, %v1024, %v1020
    %v1026 = vmul.f32 1.0, %v1025
    %v1027 = vtanh.pop %v1007
    %v1029 = vrot.slane %v974, 6
    %v1031 = vmul.f32 %v1026, %v1029
    %1033 = vrot.lane.b32.xlu0 %v1027, 64
    %v1034 = vpop.permute.xlu0 %1033
    %v1036 = vmul.f32 %v1026, %v1034
    %1038 = vrot.lane.b32.xlu0 %v1036, 32
    %v1039 = vpop.permute.xlu0 %1038
    %v1041 = vadd.f32 %v1031, %v1039
    %v1042 = vtanh.pop %v1041
    %1044 = vrot.lane.b32.xlu0 %v1042, 64
    %v1045 = vpop.permute.xlu0 %1044
    %v1047 = vmul.f32 %v1026, %v1045
    %1049 = vrot.lane.b32.xlu0 %v1047, 32
    %v1050 = vpop.permute.xlu0 %1049
    %v1051 = vsel %vm118, %v1050, 0
    %1053 = vmatpush.msra.mxu0 0.0
    %1054 = vmatpush.msra.mxu0 0.0
    %1055 = vmatpush.msra.mxu0 0.0
    %1056 = vmatpush.msra.mxu0 0.0
    %1057 = vmatpush.msra.mxu0 0.0
    %1058 = vmatpush.msra.mxu0 0.0
    %1059 = vmatpush.msra.mxu0 0.0
    %1060 = vmatpush.msra.mxu0 0.0
    %1061 = vmatpush.msra.mxu0 0.0
    %1062 = vmatpush.msra.mxu0 0.0
    %1063 = vmatpush.msra.mxu0 0.0
    %1064 = vmatpush.msra.mxu0 0.0
    %1065 = vmatpush.msra.mxu0 %v76
    %1066 = vmatpush.msra.mxu0 %v75
    %1067 = vmatpush.msra.mxu0 %v74
    %1068 = vmatpush.msra.mxu0 %v73
    %1069 = vmatmul.f32.gmra.mxu0 %v1051
    %v1070 = vpop.f32.mrf.mxu0
    %v1071 = vadd.f32 0.0, %v1070
    %1072 = vdwg.mxu0
    %v1074 = vrot.slane %v1071, 6
    %v1076 = vadd.f32 %v712, %v1074
    %v1077 = vxor.u32 %v1076, 2147483648
    %v1078 = vmul.f32 %v1077, 1.442695
    %v1079 = vpow.pop %v1078
    %v1080 = vadd.f32 %v1079, 1.0
    %v1081 = vrcp.pop %v1080
    %v1082 = vmul.f32 %v1080, %v1081
    %v1083 = vsub.f32 1.0, %v1082
    %v1084 = vmul.f32 %v1081, %v1083
    %v1085 = vadd.f32 %v1081, %v1084
    %vm1086 = vweird.f32 %v1080
    %vm1087 = vweird.f32 %v1081
    %vm1088 = vmor %vm1086, %vm1087
    %v1089 = vsel %vm1088, %v1081, %v1085
    %v1090 = vand.u32 2147483647, %v1080
    %vm1091 = vcmp.eq.f32.partialorder %v1090, 8.507059e+37
    %v1092 = vand.u32 %v1080, 2147483648
    %v1093 = vor.u32 1.1754944e-38, %v1092
    %v1094 = vsel %vm1091, %v1093, %v1089
    %v1095 = vmul.f32 1.0, %v1094
    %v1096 = vtanh.pop %v1076
    %v1098 = vrot.slane %v1041, 6
    %v1100 = vmul.f32 %v1095, %v1098
    %1102 = vrot.lane.b32.xlu0 %v1096, 64
    %v1103 = vpop.permute.xlu0 %1102
    %v1105 = vmul.f32 %v1095, %v1103
    %1107 = vrot.lane.b32.xlu0 %v1105, 32
    %v1108 = vpop.permute.xlu0 %1107
    %v1110 = vadd.f32 %v1100, %v1108
    %v1111 = vtanh.pop %v1110
    %1113 = vrot.lane.b32.xlu0 %v1111, 64
    %v1114 = vpop.permute.xlu0 %1113
    %v1116 = vmul.f32 %v1095, %v1114
    %v1118 = vrot.slane %v1116, 2
    %1119 = vrot.lane.b32.xlu0 %v1118, 32
    %v1120 = vpop.permute.xlu0 %1119
    %v1121 = vsel %vm118, %v1120, 0
    %1123 = vmatpush.msra.mxu0 0.0
    %1124 = vmatpush.msra.mxu0 0.0
    %1125 = vmatpush.msra.mxu0 0.0
    %1126 = vmatpush.msra.mxu0 0.0
    %1127 = vmatpush.msra.mxu0 0.0
    %1128 = vmatpush.msra.mxu0 0.0
    %1129 = vmatpush.msra.mxu0 0.0
    %1130 = vmatpush.msra.mxu0 0.0
    %1131 = vmatpush.msra.mxu0 0.0
    %1132 = vmatpush.msra.mxu0 0.0
    %1133 = vmatpush.msra.mxu0 0.0
    %1134 = vmatpush.msra.mxu0 0.0
    %1135 = vmatpush.msra.mxu0 %v76
    %1136 = vmatpush.msra.mxu0 %v75
    %1137 = vmatpush.msra.mxu0 %v74
    %1138 = vmatpush.msra.mxu0 %v73
    %1139 = vmatmul.f32.gmra.mxu0 %v1121
    %v1140 = vpop.f32.mrf.mxu0
    %v1141 = vadd.f32 0.0, %v1140
    %1142 = vdwg.mxu0
    %v1144 = vrot.slane %v1141, 4
    %v1146 = vadd.f32 %v712, %v1144
    %v1147 = vxor.u32 %v1146, 2147483648
    %v1148 = vmul.f32 %v1147, 1.442695
    %v1149 = vpow.pop %v1148
    %v1150 = vadd.f32 %v1149, 1.0
    %v1151 = vrcp.pop %v1150
    %v1152 = vmul.f32 %v1150, %v1151
    %v1153 = vsub.f32 1.0, %v1152
    %v1154 = vmul.f32 %v1151, %v1153
    %v1155 = vadd.f32 %v1151, %v1154
    %vm1156 = vweird.f32 %v1150
    %vm1157 = vweird.f32 %v1151
    %vm1158 = vmor %vm1156, %vm1157
    %v1159 = vsel %vm1158, %v1151, %v1155
    %v1160 = vand.u32 2147483647, %v1150
    %vm1161 = vcmp.eq.f32.partialorder %v1160, 8.507059e+37
    %v1162 = vand.u32 %v1150, 2147483648
    %v1163 = vor.u32 1.1754944e-38, %v1162
    %v1164 = vsel %vm1161, %v1163, %v1159
    %v1165 = vmul.f32 1.0, %v1164
    %v1166 = vtanh.pop %v1146
    %v1168 = vrot.slane %v1110, 6
    %v1170 = vmul.f32 %v1165, %v1168
    %1172 = vrot.lane.b32.xlu0 %v1166, 64
    %v1173 = vpop.permute.xlu0 %1172
    %v1175 = vmul.f32 %v1165, %v1173
    %1177 = vrot.lane.b32.xlu0 %v1175, 32
    %v1178 = vpop.permute.xlu0 %1177
    %v1180 = vadd.f32 %v1170, %v1178
    %v1181 = vtanh.pop %v1180
    %1183 = vrot.lane.b32.xlu0 %v1181, 64
    %v1184 = vpop.permute.xlu0 %1183
    %v1186 = vmul.f32 %v1165, %v1184
    %v1188 = vrot.slane %v1186, 4
    %1189 = vrot.lane.b32.xlu0 %v1188, 32
    %v1190 = vpop.permute.xlu0 %1189
    %v1191 = vsel %vm118, %v1190, 0
    %1193 = vmatpush.msra.mxu0 0.0
    %1194 = vmatpush.msra.mxu0 0.0
    %1195 = vmatpush.msra.mxu0 0.0
    %1196 = vmatpush.msra.mxu0 0.0
    %1197 = vmatpush.msra.mxu0 0.0
    %1198 = vmatpush.msra.mxu0 0.0
    %1199 = vmatpush.msra.mxu0 0.0
    %1200 = vmatpush.msra.mxu0 0.0
    %1201 = vmatpush.msra.mxu0 0.0
    %1202 = vmatpush.msra.mxu0 0.0
    %1203 = vmatpush.msra.mxu0 0.0
    %1204 = vmatpush.msra.mxu0 0.0
    %1205 = vmatpush.msra.mxu0 %v76
    %1206 = vmatpush.msra.mxu0 %v75
    %1207 = vmatpush.msra.mxu0 %v74
    %1208 = vmatpush.msra.mxu0 %v73
    %1209 = vmatmul.f32.gmra.mxu0 %v1191
    %v1210 = vpop.f32.mrf.mxu0
    %v1211 = vadd.f32 0.0, %v1210
    %1212 = vdwg.mxu0
    %v1214 = vrot.slane %v1211, 2
    %v1216 = vadd.f32 %v712, %v1214
    %v1217 = vxor.u32 %v1216, 2147483648
    %v1218 = vmul.f32 %v1217, 1.442695
    %v1219 = vpow.pop %v1218
    %v1220 = vadd.f32 %v1219, 1.0
    %v1221 = vrcp.pop %v1220
    %v1222 = vmul.f32 %v1220, %v1221
    %v1223 = vsub.f32 1.0, %v1222
    %v1224 = vmul.f32 %v1221, %v1223
    %v1225 = vadd.f32 %v1221, %v1224
    %vm1226 = vweird.f32 %v1220
    %vm1227 = vweird.f32 %v1221
    %vm1228 = vmor %vm1226, %vm1227
    %v1229 = vsel %vm1228, %v1221, %v1225
    %v1230 = vand.u32 2147483647, %v1220
    %vm1231 = vcmp.eq.f32.partialorder %v1230, 8.507059e+37
    %v1232 = vand.u32 %v1220, 2147483648
    %v1233 = vor.u32 1.1754944e-38, %v1232
    %v1234 = vsel %vm1231, %v1233, %v1229
    %v1235 = vmul.f32 1.0, %v1234
    %v1236 = vtanh.pop %v1216
    %v1238 = vrot.slane %v1180, 6
    %v1240 = vmul.f32 %v1235, %v1238
    %1242 = vrot.lane.b32.xlu0 %v1236, 64
    %v1243 = vpop.permute.xlu0 %1242
    %v1245 = vmul.f32 %v1235, %v1243
    %1247 = vrot.lane.b32.xlu0 %v1245, 32
    %v1248 = vpop.permute.xlu0 %1247
    %v1250 = vadd.f32 %v1240, %v1248
    %v1251 = vtanh.pop %v1250
    %1253 = vrot.lane.b32.xlu0 %v1251, 64
    %v1254 = vpop.permute.xlu0 %1253
    %v1256 = vmul.f32 %v1235, %v1254
    %v1257 = vsel %vm665, %v771, %v840
    %v1258 = vsel %vm91, %v1257, %v910
    %v1259 = vsel %vm668, %v1258, %v980
    %v1260 = vsel %vm665, %v1047, %v1116
    %v1261 = vsel %vm91, %v1260, %v1186
    %v1262 = vsel %vm668, %v1261, %v1256
    %1264 = vrot.lane.b32.xlu0 %v664, 32
    %v1265 = vpop.permute.xlu0 %1264
    %vm1267 = vcmask 261126
    %1268 = vst.msk [vmem:[#allocation7 - $0x6] sm:$0xc0] %vm1267, %v1265
    %1270 = vrot.lane.b32.xlu0 %v1256, 32
    %v1271 = vpop.permute.xlu0 %1270
    %s1273 = scalar_lea.vmem [#allocation7], 2
    %1274 = vst.msk [vmem:[%s1273 - $0x6] sm:$0xc0] %vm1267, %v1271
    %1276 = vrot.lane.b32.xlu0 %v658, 96
    %v1277 = vpop.permute.xlu0 %1276
    %1279 = vst.msk [vmem:[#allocation8 - $0x6] sm:$0xc0] %vm1267, %v1277
    %1281 = vrot.lane.b32.xlu0 %v1250, 96
    %v1282 = vpop.permute.xlu0 %1281
    %s1284 = scalar_lea.vmem [#allocation8], 2
    %1285 = vst.msk [vmem:[%s1284 - $0x6] sm:$0xc0] %vm1267, %v1282
    %v1286 = vld [vmem:[%s7] sm:$0xff]
    %v1287 = vld [vmem:[%s7 + $0x8] sm:$0xff]
    %v1288 = vld [vmem:[%s7 + $0x10] sm:$0xff]
    %v1289 = vld [vmem:[%s7 + $0x18] sm:$0xff]
    %v1290 = vld [vmem:[%s8] sm:$0x1]
    %v1292 = vperm.slane %v1290, 0
    %1296 = vrot.lane.b32.xlu0 %v1259, 32
    %v1297 = vpop.permute.xlu0 %1296
    %1298 = vrot.lane.b32.xlu0 %v1262, 32
    %v1299 = vpop.permute.xlu0 %1298
    %v1300 = vsel %vm118, %v1297, 0
    %v1302 = vsel %vm118, %v1299, 0
    %1304 = vmatpush.msra.mxu0 0.0
    %1305 = vmatpush.msra.mxu0 0.0
    %1306 = vmatpush.msra.mxu0 0.0
    %1307 = vmatpush.msra.mxu0 0.0
    %1308 = vmatpush.msra.mxu0 0.0
    %1309 = vmatpush.msra.mxu0 0.0
    %1310 = vmatpush.msra.mxu0 0.0
    %1311 = vmatpush.msra.mxu0 0.0
    %1312 = vmatpush.msra.mxu0 0.0
    %1313 = vmatpush.msra.mxu0 0.0
    %1314 = vmatpush.msra.mxu0 0.0
    %1315 = vmatpush.msra.mxu0 0.0
    %1316 = vmatpush.msra.mxu0 %v1289
    %1317 = vmatpush.msra.mxu0 %v1288
    %1318 = vmatpush.msra.mxu0 %v1287
    %1319 = vmatpush.msra.mxu0 %v1286
    %1320 = vmatmul.f32.gmra.mxu0 %v1300
    %v1321 = vpop.f32.mrf.mxu0
    %v1322 = vadd.f32 %v1292, %v1321
    %1323 = vmatmul.f32.gmra.mxu0 %v1302
    %v1324 = vpop.f32.mrf.mxu0
    %v1325 = vadd.f32 %v1292, %v1324
    %1326 = vdwg.mxu0
    %v1328 = vrot.slane %v1322, 2
    %v1330 = vmax.f32 %v1322, %v1328
    %v1331 = vrot.slane %v1322, 4
    %v1333 = vmax.f32 %v1330, %v1331
    %v1334 = vrot.slane %v1322, 6
    %v1336 = vmax.f32 %v1333, %v1334
    %v1337 = vmax.f32 %v1336, %v1325
    %v1339 = vrot.slane %v1325, 2
    %v1341 = vmax.f32 %v1337, %v1339
    %v1342 = vrot.slane %v1325, 4
    %v1344 = vmax.f32 %v1341, %v1342
    %v1345 = vrot.slane %v1325, 6
    %v1347 = vmax.f32 %v1344, %v1345
    %v1348 = vsub.f32 %v1322, %v1347
    %v1349 = vmul.f32 %v1348, 1.442695
    %v1350 = vpow.pop %v1349
    %v1352 = vrot.slane %v1347, 6
    %v1354 = vsub.f32 %v1322, %v1352
    %v1355 = vmul.f32 %v1354, 1.442695
    %v1356 = vpow.pop %v1355
    %v1357 = vrot.slane %v1347, 4
    %v1359 = vsub.f32 %v1322, %v1357
    %v1360 = vmul.f32 %v1359, 1.442695
    %v1361 = vpow.pop %v1360
    %v1362 = vrot.slane %v1347, 2
    %v1364 = vsub.f32 %v1322, %v1362
    %v1365 = vmul.f32 %v1364, 1.442695
    %v1366 = vpow.pop %v1365
    %v1367 = vsub.f32 %v1325, %v1347
    %v1368 = vmul.f32 %v1367, 1.442695
    %v1369 = vpow.pop %v1368
    %v1370 = vsub.f32 %v1325, %v1352
    %v1371 = vmul.f32 %v1370, 1.442695
    %v1372 = vpow.pop %v1371
    %v1373 = vsub.f32 %v1325, %v1357
    %v1374 = vmul.f32 %v1373, 1.442695
    %v1375 = vpow.pop %v1374
    %v1376 = vsub.f32 %v1325, %v1362
    %v1377 = vmul.f32 %v1376, 1.442695
    %v1378 = vpow.pop %v1377
    %v1380 = vrot.slane %v1356, 2
    %v1382 = vadd.f32 %v1350, %v1380
    %v1384 = vrot.slane %v1361, 4
    %v1386 = vadd.f32 %v1382, %v1384
    %v1388 = vrot.slane %v1366, 6
    %v1390 = vadd.f32 %v1386, %v1388
    %v1391 = vadd.f32 %v1390, %v1369
    %v1393 = vrot.slane %v1372, 2
    %v1395 = vadd.f32 %v1391, %v1393
    %v1397 = vrot.slane %v1375, 4
    %v1399 = vadd.f32 %v1395, %v1397
    %v1401 = vrot.slane %v1378, 6
    %v1403 = vadd.f32 %v1399, %v1401
    %v1404 = vlog2.pop %v1403
    %v1405 = vmul.f32 %v1404, 0.6931472
    %v1406 = vadd.f32 %v1405, %v1347
    %v1407 = vsub.f32 %v1322, %v1406
    %v1409 = vrot.slane %v1406, 6
    %v1411 = vsub.f32 %v1322, %v1409
    %v1412 = vrot.slane %v1406, 4
    %v1414 = vsub.f32 %v1322, %v1412
    %v1415 = vrot.slane %v1406, 2
    %v1417 = vsub.f32 %v1322, %v1415
    %v1418 = vsub.f32 %v1325, %v1406
    %v1419 = vsub.f32 %v1325, %v1409
    %v1420 = vsub.f32 %v1325, %v1412
    %v1421 = vsub.f32 %v1325, %v1415
    %v1422 = vsel %vm665, %v1407, %v1411
    %v1423 = vsel %vm91, %v1422, %v1414
    %v1424 = vsel %vm668, %v1423, %v1417
    %v1425 = vsel %vm665, %v1418, %v1419
    %v1426 = vsel %vm91, %v1425, %v1420
    %v1427 = vsel %vm668, %v1426, %v1421
    %vm1428 = vcmask 15360
    %1429 = vst.msk [vmem:[%s9] sm:$0xff] %vm1428, %v1424
    %1430 = vst.msk [vmem:[%s9 + $0x8] sm:$0xff] %vm1428, %v1427
    // Predicated region
    $region46: #{discriminator_forward.1} parent=1 // pred_check
      _
    $region47: #{discriminator_forward.1} parent=1 // pred_check_branch
      %1432 = sbr.rel (0) target = $region49
    $region48: #{discriminator_forward.1} parent=1 // pred_region
      _
    $region49: #{discriminator_forward.1} parent=1 // pred_fallthru
      _
    // Predicated region
    $region50: #{discriminator_forward.1} parent=1 // pred_check
      _
    $region51: #{discriminator_forward.1} parent=1 // pred_check_branch
      %1434 = sbr.rel (0) target = $region53
    $region52: #{discriminator_forward.1} parent=1 // pred_region
      %1436 = vsyncadd [#allocation4], 0
      %s1437 = sshll.u32 [#allocation7], 4
      %s1438 = int_to_ptr.vmem [resolvable:$true] %s1437
      %s1439 = sshll.u32 %s10, 4
      %s1440 = int_to_ptr.hbm [resolvable:$true] %s1439
      %1445 = dma.vmem_to_hbm [thread:$0]  %s1438, 64, %s1440, [#allocation4], 32, 32, 2
    $region53: #{discriminator_forward.1} parent=1 // pred_fallthru
      _
    // Predicated region
    $region54: #{discriminator_forward.1} parent=1 // pred_check
      _
    $region55: #{discriminator_forward.1} parent=1 // pred_check_branch
      %1447 = sbr.rel (0) target = $region57
    $region56: #{discriminator_forward.1} parent=1 // pred_region
      %1449 = vsyncadd [#allocation9], 0
      %s1450 = sshll.u32 [#allocation8], 4
      %s1451 = int_to_ptr.vmem [resolvable:$true] %s1450
      %s1452 = sshll.u32 %s11, 4
      %s1453 = int_to_ptr.hbm [resolvable:$true] %s1452
      %1458 = dma.vmem_to_hbm [thread:$0]  %s1451, 64, %s1453, [#allocation9], 32, 32, 2
    $region57: #{discriminator_forward.1} parent=1 // pred_fallthru
      _
    // Predicated region
    $region58: #{discriminator_forward.1} parent=1 // pred_check
      _
    $region59: #{discriminator_forward.1} parent=1 // pred_check_branch
      %1460 = sbr.rel (0) target = $region61
    $region60: #{discriminator_forward.1} parent=1 // pred_region
      _
    $region61: #{discriminator_forward.1} parent=1 // pred_fallthru
      _
    // Predicated region
    $region62: #{discriminator_forward.1} parent=1 // pred_check
      _
    $region63: #{discriminator_forward.1} parent=1 // pred_check_branch
      %1462 = sbr.rel (0) target = $region65
    $region64: #{discriminator_forward.1} parent=1 // pred_region
      %1464 = dma.done [#allocation4], 64
    $region65: #{discriminator_forward.1} parent=1 // pred_fallthru
      _
    // Predicated region
    $region66: #{discriminator_forward.1} parent=1 // pred_check
      _
    $region67: #{discriminator_forward.1} parent=1 // pred_check_branch
      %1466 = sbr.rel (0) target = $region69
    $region68: #{discriminator_forward.1} parent=1 // pred_region
      %1468 = dma.done [#allocation9], 64
    $region69: #{discriminator_forward.1} parent=1 // pred_fallthru
      _
    %1469 = vsyncpa [#allocation3], 1
    %1470 = vsyncpa [#allocation6], 1
    %1471 = vsyncpa [#allocation4], 1
    %1472 = vsyncpa [#allocation9], 1

</llo_original>
